<compile_context>
chip_gen: v7x
topology: tpu7x:2x2x1
jax: 0.10.0
libtpu: 0.0.40
codegen_flags: <defaults>
</compile_context>

<pallas_src>
import jax
import jax.numpy as jnp
from jax.experimental import pallas as pl
from jax.experimental.pallas import tpu as pltpu


def _round_up(x, m):
    return ((x + m - 1) // m) * m


def classifier_kernel(
    img_ref, txt_ref,          # (TB, IMG) f32, (TB, TXT) f32   (cast to bf16 in-kernel)
    w1a_ref, w1b_ref,          # (IMG, H) bf16, (TXT, H) bf16   (BN1 scale folded in)
    w2_ref, w3_ref,            # (H, H) bf16                    (BN2/BN3 scale folded in)
    shifts_ref,                # (3, H) f32: per-layer (bias*scale + shift)
    wo_ref,                    # (1, H) f32: output weight row
    bo_ref,                    # (1,)  f32 scalar in SMEM: output bias
    o_ref,                     # (1, 1, TB) f32: lane-dense probabilities
):
    shifts = shifts_ref[...]                                   # (3, H) f32

    # In-kernel bf16 cast of the activation tiles (wrapper feeds f32 directly).
    img = img_ref[...].astype(w1a_ref.dtype)
    txt = txt_ref[...].astype(w1b_ref.dtype)

    # ---- layer 1: split matmul over image/text halves of the input -----------
    h = jnp.dot(img, w1a_ref[...], preferred_element_type=jnp.float32)
    h = h + jnp.dot(txt, w1b_ref[...], preferred_element_type=jnp.float32)
    h = jnp.maximum(h + shifts[0:1, :], 0.0)                   # BN1 + bias folded; relu

    # ---- layer 2 --------------------------------------------------------------
    h = jnp.dot(h.astype(w2_ref.dtype), w2_ref[...], preferred_element_type=jnp.float32)
    h = jnp.maximum(h + shifts[1:2, :], 0.0)

    # ---- layer 3 --------------------------------------------------------------
    h = jnp.dot(h.astype(w3_ref.dtype), w3_ref[...], preferred_element_type=jnp.float32)
    h = jnp.maximum(h + shifts[2:3, :], 0.0)

    # ---- output head ----------------------------------------------------------
    # Contract the hidden dim of the (1,H) weight row against the hidden dim of
    # the (tb,H) activations -> (1, tb): logits land directly in the lane dim of
    # the lane-dense output block (no (tb,1) masked partial store).
    logits = jnp.einsum("oh,bh->ob", wo_ref[...], h,
                        preferred_element_type=jnp.float32)    # (1, tb)
    logits = logits + bo_ref[0]
    # Exact sigmoid (exp on EUP, one cheap divide on a (1,tb) vector).
    o_ref[...] = (1.0 / (1.0 + jnp.exp(-logits)))[None]        # (1, 1, tb)


def prepare_params(params, image_dim, *, eps=1e-5, compute_dtype=jnp.bfloat16):
    """One-time fold of Linear bias + BatchNorm running stats into weights/shifts.

    Hoisted out of classifier_forward so per-call work is just the Pallas kernel.
    params: dict with fc{1,2,3}_{w,b}, bn{1,2,3}=(gamma,beta,mean,var), out_{w,b}.
    """
    H = params["fc1_w"].shape[0]

    def fold(w, b, bn):
        # BN(W x + b) = (W * s) x + (b*s + t)  with s = g/sqrt(v+eps), t = beta - mean*s
        gamma, beta, mean, var = bn
        s = gamma.astype(jnp.float32) / jnp.sqrt(var.astype(jnp.float32) + eps)
        t = beta.astype(jnp.float32) - mean.astype(jnp.float32) * s
        w_folded = w.astype(jnp.float32).T * s[None, :]        # (in, out), col j scaled by s[j]
        shift = b.astype(jnp.float32) * s + t                  # (out,)
        return w_folded, shift

    w1, sh1 = fold(params["fc1_w"], params["fc1_b"], params["bn1"])
    w2, sh2 = fold(params["fc2_w"], params["fc2_b"], params["bn2"])
    w3, sh3 = fold(params["fc3_w"], params["fc3_b"], params["bn3"])

    return {
        "w1a": jnp.asarray(w1[:image_dim], compute_dtype),     # (IMG, H)
        "w1b": jnp.asarray(w1[image_dim:], compute_dtype),     # (TXT, H)
        "w2": jnp.asarray(w2, compute_dtype),                  # (H, H)
        "w3": jnp.asarray(w3, compute_dtype),                  # (H, H)
        "shifts": jnp.stack([sh1, sh2, sh3], 0).astype(jnp.float32),  # (3, H)
        "wo": params["out_w"].astype(jnp.float32).reshape(1, H),      # (1, H)
        "bo": params["out_b"].astype(jnp.float32).reshape(1),         # (1,) -> SMEM scalar
    }


def classifier_forward(image_features, text_features, prepared, *, block_b=512):
    """Forward pass using pre-folded parameters from prepare_params()."""
    B, img_dim = image_features.shape
    txt_dim = text_features.shape[1]
    H = prepared["w2"].shape[0]
    in_dim = img_dim + txt_dim

    # ---- batch tile selection -------------------------------------------------
    tb = min(block_b, B)
    if B > 256:
        # Guarantee >= 2 grid steps so dimension_semantics=("parallel",) can shard
        # the batch across the two TensorCores on v7x (no effect on v5e/v6e).
        tb = min(tb, _round_up(pl.cdiv(B, 2), 128))
    if tb < B:
        tb = _round_up(tb, 8)          # sublane alignment for partial-batch tiles
    # NOTE(v5e): for very large B a deeper activation pipeline (pl.Buffered(3))
    # and tb=256 may hide DMA better; left at defaults here.

    # ---- VMEM budgeting ---------------------------------------------------------
    def vmem_estimate(t):
        weights = 2 * (in_dim * H + 2 * H * H) * 2     # bf16 weights (x2: worst-case double-buffer)
        vectors = 4 * (4 * H + 128)                    # shifts + wo (f32)
        acts = 4 * t * in_dim * 2                      # f32 img+txt tiles, double-buffered
        outs = 4 * t * 8 * 2                           # padded output blocks
        interm = 4 * t * H * 4                         # live f32 hidden tensors + scratch headroom
        return weights + vectors + acts + outs + interm

    VMEM_BUDGET = 40 << 20                             # conservative across v5e/v6e/v7x
    while vmem_estimate(tb) > VMEM_BUDGET and tb > 128:
        tb = max(128, tb // 2)
    # TODO(synk): for very large hidden_dim the resident (H,H) weights stop fitting
    # VMEM (notably v7x's 64 MiB); they would need a K/N-tiled 'arbitrary' grid axis.

    grid_n = pl.cdiv(B, tb)
    vmem_limit = int(min(64 << 20, max(32 << 20, 2 * vmem_estimate(tb))))

    def run(single_buffer_weights):
        if single_buffer_weights:
            def resident(shape):
                # Constant block index + single buffering: stays VMEM-resident,
                # half the VMEM footprint of the default double buffer.
                return pl.BlockSpec(shape, lambda i: (0,) * len(shape),
                                    pipeline_mode=pl.Buffered(1))
        else:
            def resident(shape):
                return pl.BlockSpec(shape, lambda i: (0,) * len(shape))

        call = pl.pallas_call(
            classifier_kernel,
            out_shape=jax.ShapeDtypeStruct((grid_n, 1, tb), jnp.float32),
            grid=(grid_n,),
            in_specs=[
                pl.BlockSpec((tb, img_dim), lambda i: (i, 0)),     # image tile (pipelined)
                pl.BlockSpec((tb, txt_dim), lambda i: (i, 0)),     # text tile  (pipelined)
                resident((img_dim, H)),                            # w1a
                resident((txt_dim, H)),                            # w1b
                resident((H, H)),                                  # w2
                resident((H, H)),                                  # w3
                resident((3, H)),                                  # stacked shifts
                resident((1, H)),                                  # output weight row
                pl.BlockSpec(memory_space=pltpu.MemorySpace.SMEM), # output bias scalar
            ],
            out_specs=pl.BlockSpec((1, 1, tb), lambda i: (i, 0, 0)),   # lane-dense
            compiler_params=pltpu.CompilerParams(
                dimension_semantics=("parallel",),                 # megacore sharding on v7x
                vmem_limit_bytes=vmem_limit,
            ),
        )
        return call(image_features, text_features,
                    prepared["w1a"], prepared["w1b"], prepared["w2"], prepared["w3"],
                    prepared["shifts"], prepared["wo"], prepared["bo"])

    try:
        out = run(True)
    except Exception:
        # pipeline_mode=pl.Buffered(1) unsupported on this jax build: fall back to
        # the default (double-buffered) resident specs.
        out = run(False)

    # (grid_n, 1, tb) lane-dense slab -> (B, 1); padded tail rows (if any) dropped.
    return out.reshape(grid_n * tb, 1)[:B]


def init_params(key, image_dim, text_dim, hidden_dim):
    """Deterministic synthetic parameters mirroring the PyTorch module shapes."""
    d_in = image_dim + text_dim
    ks = jax.random.split(key, 12)

    def lin(kw, kb, fan_in, fan_out):
        bound = 1.0 / jnp.sqrt(fan_in)
        w = jax.random.uniform(kw, (fan_out, fan_in), jnp.float32, -bound, bound)
        b = jax.random.uniform(kb, (fan_out,), jnp.float32, -bound, bound)
        return w, b

    def bn(kg, kb, h):
        gamma = 1.0 + 0.1 * jax.random.normal(kg, (h,), jnp.float32)
        beta = 0.1 * jax.random.normal(kb, (h,), jnp.float32)
        mean = 0.05 * jax.random.normal(jax.random.fold_in(kg, 1), (h,), jnp.float32)
        var = jnp.abs(1.0 + 0.1 * jax.random.normal(jax.random.fold_in(kb, 1), (h,), jnp.float32))
        return gamma, beta, mean, var

    p = {}
    p["fc1_w"], p["fc1_b"] = lin(ks[0], ks[1], d_in, hidden_dim)
    p["fc2_w"], p["fc2_b"] = lin(ks[2], ks[3], hidden_dim, hidden_dim)
    p["fc3_w"], p["fc3_b"] = lin(ks[4], ks[5], hidden_dim, hidden_dim)
    p["out_w"], p["out_b"] = lin(ks[6], ks[7], hidden_dim, 1)
    p["bn1"] = bn(ks[8], ks[9], hidden_dim)
    p["bn2"] = bn(ks[10], ks[11], hidden_dim)
    p["bn3"] = bn(jax.random.fold_in(ks[8], 7), jax.random.fold_in(ks[9], 7), hidden_dim)
    return p


def reference_forward(image_features, text_features, params):
    """Pure-JAX f32 reference with identical (eval-mode) semantics."""
    eps = 1e-5
    x = jnp.concatenate([image_features, text_features], axis=1).astype(jnp.float32)

    def layer(x, w, b, bn_p):
        gamma, beta, mean, var = bn_p
        h = x @ w.T + b
        h = (h - mean) / jnp.sqrt(var + eps) * gamma + beta
        return jnp.maximum(h, 0.0)

    h = layer(x, params["fc1_w"], params["fc1_b"], params["bn1"])
    h = layer(h, params["fc2_w"], params["fc2_b"], params["bn2"])
    h = layer(h, params["fc3_w"], params["fc3_b"], params["bn3"])
    out = h @ params["out_w"].T + params["out_b"]
    return jax.nn.sigmoid(out)


if __name__ == "__main__":
    # Small shapes consistent with the module: batch=48, image_dim=32, text_dim=32, hidden=128.
    B, IMG, TXT, HID = 48, 32, 32, 128
    key = jax.random.PRNGKey(0)
    k_img, k_txt, k_par = jax.random.split(key, 3)

    image_features = jax.random.normal(k_img, (B, IMG), jnp.float32)
    text_features = jax.random.normal(k_txt, (B, TXT), jnp.float32)
    params = init_params(k_par, IMG, TXT, HID)

    # One-time parameter preparation (BN/bias folding, casts) hoisted out of the forward.
    prepared = prepare_params(params, IMG)

    # block_b=16 forces a 3-step batch grid so the tiled/pipelined path is exercised.
    out = classifier_forward(image_features, text_features, prepared, block_b=16)
    out = jax.block_until_ready(out)

    ref = reference_forward(image_features, text_features, params)
    assert out.shape == (B, 1)
    # bf16 matmul inputs (f32 accumulation) -> loosened tolerance vs the f32 reference.
    max_err = float(jnp.max(jnp.abs(out - ref)))
    assert max_err < 2e-2, (max_err, out[:4], ref[:4])

    print("KERNEL_OK")
</pallas_src>

<mosaic_0001>
module attributes {stable_mosaic.version = 11 : i64} {
  func.func @classifier_kernel(%arg0: i32, %arg1: memref<16x32xf32, #tpu.memory_space<vmem>>, %arg2: memref<16x32xf32, #tpu.memory_space<vmem>>, %arg3: memref<32x128xbf16, #tpu.memory_space<vmem>>, %arg4: memref<32x128xbf16, #tpu.memory_space<vmem>>, %arg5: memref<128x128xbf16, #tpu.memory_space<vmem>>, %arg6: memref<128x128xbf16, #tpu.memory_space<vmem>>, %arg7: memref<3x128xf32, #tpu.memory_space<vmem>>, %arg8: memref<1x128xf32, #tpu.memory_space<vmem>>, %arg9: memref<1xf32, #tpu.memory_space<smem>>, %arg10: memref<1x1x16xf32, #tpu.memory_space<vmem>>) attributes {dimension_semantics = [#tpu.dimension_semantics<parallel>], iteration_bounds = array<i64: 3>, scalar_prefetch = 0 : i64, scratch_operands = 0 : i64, tpu.core_type = #tpu.core_type<tc>, window_params = [{transform_indices = @transform_0, window_bounds = array<i64: 16, 32>}, {transform_indices = @transform_1, window_bounds = array<i64: 16, 32>}, {pipeline_mode = #tpu.pipeline_mode<synchronous>, transform_indices = @transform_2, window_bounds = array<i64: 32, 128>}, {pipeline_mode = #tpu.pipeline_mode<synchronous>, transform_indices = @transform_3, window_bounds = array<i64: 32, 128>}, {pipeline_mode = #tpu.pipeline_mode<synchronous>, transform_indices = @transform_4, window_bounds = array<i64: 128, 128>}, {pipeline_mode = #tpu.pipeline_mode<synchronous>, transform_indices = @transform_5, window_bounds = array<i64: 128, 128>}, {pipeline_mode = #tpu.pipeline_mode<synchronous>, transform_indices = @transform_6, window_bounds = array<i64: 3, 128>}, {pipeline_mode = #tpu.pipeline_mode<synchronous>, transform_indices = @transform_7, window_bounds = array<i64: 1, 128>}, {transform_indices = @transform_8, window_bounds = array<i64: 1>}, {transform_indices = @transform_9, window_bounds = array<i64: 1, 1, 16>}]} {
    %c0 = arith.constant 0 : index
    %c0_0 = arith.constant 0 : index
    %0 = vector.load %arg7[%c0, %c0_0] : memref<3x128xf32, #tpu.memory_space<vmem>>, vector<3x128xf32>
    %c0_1 = arith.constant 0 : index
    %c0_2 = arith.constant 0 : index
    %1 = vector.load %arg1[%c0_1, %c0_2] : memref<16x32xf32, #tpu.memory_space<vmem>>, vector<16x32xf32>
    %2 = arith.truncf %1 : vector<16x32xf32> to vector<16x32xbf16>
    %c0_3 = arith.constant 0 : index
    %c0_4 = arith.constant 0 : index
    %3 = vector.load %arg2[%c0_3, %c0_4] : memref<16x32xf32, #tpu.memory_space<vmem>>, vector<16x32xf32>
    %4 = arith.truncf %3 : vector<16x32xf32> to vector<16x32xbf16>
    %c0_5 = arith.constant 0 : index
    %c0_6 = arith.constant 0 : index
    %5 = vector.load %arg3[%c0_5, %c0_6] : memref<32x128xbf16, #tpu.memory_space<vmem>>, vector<32x128xbf16>
    %cst = arith.constant dense<0.000000e+00> : vector<16x128xf32>
    %6 = tpu.matmul %2, %5, %cst {dimension_numbers = #tpu.dot_dimension_numbers<[1], [0], [0], [1], [0, 0, 1, 1], [], []>} : vector<16x32xbf16>, vector<32x128xbf16>, vector<16x128xf32> -> vector<16x128xf32>
    %c0_7 = arith.constant 0 : index
    %c0_8 = arith.constant 0 : index
    %7 = vector.load %arg4[%c0_7, %c0_8] : memref<32x128xbf16, #tpu.memory_space<vmem>>, vector<32x128xbf16>
    %cst_9 = arith.constant dense<0.000000e+00> : vector<16x128xf32>
    %8 = tpu.matmul %4, %7, %cst_9 {dimension_numbers = #tpu.dot_dimension_numbers<[1], [0], [0], [1], [0, 0, 1, 1], [], []>} : vector<16x32xbf16>, vector<32x128xbf16>, vector<16x128xf32> -> vector<16x128xf32>
    %9 = arith.addf %6, %8 : vector<16x128xf32>
    %10 = vector.extract_strided_slice %0 {offsets = [0, 0], sizes = [1, 128], strides = [1, 1]} : vector<3x128xf32> to vector<1x128xf32>
    %11 = vector.broadcast %10 : vector<1x128xf32> to vector<16x128xf32>
    %12 = arith.addf %9, %11 : vector<16x128xf32>
    %cst_10 = arith.constant 0.000000e+00 : f32
    %13 = vector.broadcast %cst_10 : f32 to vector<16x128xf32>
    %14 = arith.maximumf %12, %13 : vector<16x128xf32>
    %15 = arith.truncf %14 : vector<16x128xf32> to vector<16x128xbf16>
    %c0_11 = arith.constant 0 : index
    %c0_12 = arith.constant 0 : index
    %16 = vector.load %arg5[%c0_11, %c0_12] : memref<128x128xbf16, #tpu.memory_space<vmem>>, vector<128x128xbf16>
    %cst_13 = arith.constant dense<0.000000e+00> : vector<16x128xf32>
    %17 = tpu.matmul %15, %16, %cst_13 {dimension_numbers = #tpu.dot_dimension_numbers<[1], [0], [0], [1], [0, 0, 1, 1], [], []>} : vector<16x128xbf16>, vector<128x128xbf16>, vector<16x128xf32> -> vector<16x128xf32>
    %18 = vector.extract_strided_slice %0 {offsets = [1, 0], sizes = [1, 128], strides = [1, 1]} : vector<3x128xf32> to vector<1x128xf32>
    %19 = vector.broadcast %18 : vector<1x128xf32> to vector<16x128xf32>
    %20 = arith.addf %17, %19 : vector<16x128xf32>
    %cst_14 = arith.constant 0.000000e+00 : f32
    %21 = vector.broadcast %cst_14 : f32 to vector<16x128xf32>
    %22 = arith.maximumf %20, %21 : vector<16x128xf32>
    %23 = arith.truncf %22 : vector<16x128xf32> to vector<16x128xbf16>
    %c0_15 = arith.constant 0 : index
    %c0_16 = arith.constant 0 : index
    %24 = vector.load %arg6[%c0_15, %c0_16] : memref<128x128xbf16, #tpu.memory_space<vmem>>, vector<128x128xbf16>
    %cst_17 = arith.constant dense<0.000000e+00> : vector<16x128xf32>
    %25 = tpu.matmul %23, %24, %cst_17 {dimension_numbers = #tpu.dot_dimension_numbers<[1], [0], [0], [1], [0, 0, 1, 1], [], []>} : vector<16x128xbf16>, vector<128x128xbf16>, vector<16x128xf32> -> vector<16x128xf32>
    %26 = vector.extract_strided_slice %0 {offsets = [2, 0], sizes = [1, 128], strides = [1, 1]} : vector<3x128xf32> to vector<1x128xf32>
    %27 = vector.broadcast %26 : vector<1x128xf32> to vector<16x128xf32>
    %28 = arith.addf %25, %27 : vector<16x128xf32>
    %cst_18 = arith.constant 0.000000e+00 : f32
    %29 = vector.broadcast %cst_18 : f32 to vector<16x128xf32>
    %30 = arith.maximumf %28, %29 : vector<16x128xf32>
    %c0_19 = arith.constant 0 : index
    %c0_20 = arith.constant 0 : index
    %31 = vector.load %arg8[%c0_19, %c0_20] : memref<1x128xf32, #tpu.memory_space<vmem>>, vector<1x128xf32>
    "tpu.trace_start"() <{level = 10 : i32, message = "oh,bh->ob"}> : () -> ()
    %cst_21 = arith.constant dense<0.000000e+00> : vector<1x16xf32>
    %32 = tpu.matmul %31, %30, %cst_21 {dimension_numbers = #tpu.dot_dimension_numbers<[1], [1], [0], [0], [0, 0, 1, 0], [], []>} : vector<1x128xf32>, vector<16x128xf32>, vector<1x16xf32> -> vector<1x16xf32>
    "tpu.trace_stop"() : () -> ()
    %c0_22 = arith.constant 0 : index
    %33 = memref.load %arg9[%c0_22] : memref<1xf32, #tpu.memory_space<smem>>
    %34 = vector.broadcast %33 : f32 to vector<1x16xf32>
    %35 = arith.addf %32, %34 : vector<1x16xf32>
    %cst_23 = arith.constant 0.000000e+00 : f32
    %36 = vector.broadcast %cst_23 : f32 to vector<1x16xf32>
    %37 = arith.subf %36, %35 : vector<1x16xf32>
    %38 = math.exp %37 : vector<1x16xf32>
    %cst_24 = arith.constant 1.000000e+00 : f32
    %39 = vector.broadcast %cst_24 : f32 to vector<1x16xf32>
    %40 = arith.addf %39, %38 : vector<1x16xf32>
    %cst_25 = arith.constant 1.000000e+00 : f32
    %41 = vector.broadcast %cst_25 : f32 to vector<1x16xf32>
    %42 = arith.divf %41, %40 : vector<1x16xf32>
    %43 = vector.shape_cast %42 : vector<1x16xf32> to vector<1x1x16xf32>
    %c0_26 = arith.constant 0 : index
    %c0_27 = arith.constant 0 : index
    %c0_28 = arith.constant 0 : index
    %44 = vector.load %arg10[%c0_26, %c0_27, %c0_28] : memref<1x1x16xf32, #tpu.memory_space<vmem>>, vector<1x1x16xf32>
    tpu.vector_store %arg10[%c0_26, %c0_27, %c0_28], %43 {strides = array<i32>} : memref<1x1x16xf32, #tpu.memory_space<vmem>>, vector<1x1x16xf32>,
    return
  }
  func.func @transform_0(%arg0: i32) -> (i32, i32) {
    %c0_i32 = arith.constant 0 : i32
    %c0_i32_0 = arith.constant 0 : i32
    return %arg0, %c0_i32 : i32, i32
  }
  func.func @transform_1(%arg0: i32) -> (i32, i32) {
    %c0_i32 = arith.constant 0 : i32
    %c0_i32_0 = arith.constant 0 : i32
    return %arg0, %c0_i32 : i32, i32
  }
  func.func @transform_2(%arg0: i32) -> (i32, i32) {
    %c0_i32 = arith.constant 0 : i32
    %c0_i32_0 = arith.constant 0 : i32
    %c0_i32_1 = arith.constant 0 : i32
    return %c0_i32, %c0_i32_0 : i32, i32
  }
  func.func @transform_3(%arg0: i32) -> (i32, i32) {
    %c0_i32 = arith.constant 0 : i32
    %c0_i32_0 = arith.constant 0 : i32
    %c0_i32_1 = arith.constant 0 : i32
    return %c0_i32, %c0_i32_0 : i32, i32
  }
  func.func @transform_4(%arg0: i32) -> (i32, i32) {
    %c0_i32 = arith.constant 0 : i32
    %c0_i32_0 = arith.constant 0 : i32
    %c0_i32_1 = arith.constant 0 : i32
    return %c0_i32, %c0_i32_0 : i32, i32
  }
  func.func @transform_5(%arg0: i32) -> (i32, i32) {
    %c0_i32 = arith.constant 0 : i32
    %c0_i32_0 = arith.constant 0 : i32
    %c0_i32_1 = arith.constant 0 : i32
    return %c0_i32, %c0_i32_0 : i32, i32
  }
  func.func @transform_6(%arg0: i32) -> (i32, i32) {
    %c0_i32 = arith.constant 0 : i32
    %c0_i32_0 = arith.constant 0 : i32
    %c0_i32_1 = arith.constant 0 : i32
    return %c0_i32, %c0_i32_0 : i32, i32
  }
  func.func @transform_7(%arg0: i32) -> (i32, i32) {
    %c0_i32 = arith.constant 0 : i32
    %c0_i32_0 = arith.constant 0 : i32
    %c0_i32_1 = arith.constant 0 : i32
    return %c0_i32, %c0_i32_0 : i32, i32
  }
  func.func @transform_8(%arg0: i32) -> i32 {
    %c0_i32 = arith.constant 0 : i32
    %c0_i32_0 = arith.constant 0 : i32
    return %c0_i32 : i32
  }
  func.func @transform_9(%arg0: i32) -> (i32, i32, i32) {
    %c0_i32 = arith.constant 0 : i32
    %c0_i32_0 = arith.constant 0 : i32
    %c0_i32_1 = arith.constant 0 : i32
    return %arg0, %c0_i32, %c0_i32_0 : i32, i32, i32
  }
}

module attributes {stable_mosaic.version = 11 : i64} {
  func.func @classifier_kernel(%arg0: i32, %arg1: memref<16x32xf32, #tpu.memory_space<vmem>>, %arg2: memref<16x32xf32, #tpu.memory_space<vmem>>, %arg3: memref<32x128xbf16, #tpu.memory_space<vmem>>, %arg4: memref<32x128xbf16, #tpu.memory_space<vmem>>, %arg5: memref<128x128xbf16, #tpu.memory_space<vmem>>, %arg6: memref<128x128xbf16, #tpu.memory_space<vmem>>, %arg7: memref<3x128xf32, #tpu.memory_space<vmem>>, %arg8: memref<1x128xf32, #tpu.memory_space<vmem>>, %arg9: memref<1xf32, #tpu.memory_space<smem>>, %arg10: memref<1x1x16xf32, #tpu.memory_space<vmem>>) attributes {dimension_semantics = [#tpu.dimension_semantics<parallel>], iteration_bounds = array<i64: 3>, scalar_prefetch = 0 : i64, scratch_operands = 0 : i64, tpu.core_type = #tpu.core_type<tc>, window_params = [{transform_indices = @transform_0, window_bounds = array<i64: 16, 32>}, {transform_indices = @transform_1, window_bounds = array<i64: 16, 32>}, {pipeline_mode = #tpu.pipeline_mode<synchronous>, transform_indices = @transform_2, window_bounds = array<i64: 32, 128>}, {pipeline_mode = #tpu.pipeline_mode<synchronous>, transform_indices = @transform_3, window_bounds = array<i64: 32, 128>}, {pipeline_mode = #tpu.pipeline_mode<synchronous>, transform_indices = @transform_4, window_bounds = array<i64: 128, 128>}, {pipeline_mode = #tpu.pipeline_mode<synchronous>, transform_indices = @transform_5, window_bounds = array<i64: 128, 128>}, {pipeline_mode = #tpu.pipeline_mode<synchronous>, transform_indices = @transform_6, window_bounds = array<i64: 3, 128>}, {pipeline_mode = #tpu.pipeline_mode<synchronous>, transform_indices = @transform_7, window_bounds = array<i64: 1, 128>}, {transform_indices = @transform_8, window_bounds = array<i64: 1>}, {transform_indices = @transform_9, window_bounds = array<i64: 1, 1, 16>}]} {
    %c0 = arith.constant 0 : index
    %c0_0 = arith.constant 0 : index
    %0 = vector.load %arg7[%c0, %c0_0] : memref<3x128xf32, #tpu.memory_space<vmem>>, vector<3x128xf32>
    %c0_1 = arith.constant 0 : index
    %c0_2 = arith.constant 0 : index
    %1 = vector.load %arg1[%c0_1, %c0_2] : memref<16x32xf32, #tpu.memory_space<vmem>>, vector<16x32xf32>
    %2 = arith.truncf %1 : vector<16x32xf32> to vector<16x32xbf16>
    %c0_3 = arith.constant 0 : index
    %c0_4 = arith.constant 0 : index
    %3 = vector.load %arg2[%c0_3, %c0_4] : memref<16x32xf32, #tpu.memory_space<vmem>>, vector<16x32xf32>
    %4 = arith.truncf %3 : vector<16x32xf32> to vector<16x32xbf16>
    %c0_5 = arith.constant 0 : index
    %c0_6 = arith.constant 0 : index
    %5 = vector.load %arg3[%c0_5, %c0_6] : memref<32x128xbf16, #tpu.memory_space<vmem>>, vector<32x128xbf16>
    %cst = arith.constant dense<0.000000e+00> : vector<16x128xf32>
    %6 = tpu.matmul %2, %5, %cst {dimension_numbers = #tpu.dot_dimension_numbers<[1], [0], [0], [1], [0, 0, 1, 1], [], []>} : vector<16x32xbf16>, vector<32x128xbf16>, vector<16x128xf32> -> vector<16x128xf32>
    %c0_7 = arith.constant 0 : index
    %c0_8 = arith.constant 0 : index
    %7 = vector.load %arg4[%c0_7, %c0_8] : memref<32x128xbf16, #tpu.memory_space<vmem>>, vector<32x128xbf16>
    %cst_9 = arith.constant dense<0.000000e+00> : vector<16x128xf32>
    %8 = tpu.matmul %4, %7, %cst_9 {dimension_numbers = #tpu.dot_dimension_numbers<[1], [0], [0], [1], [0, 0, 1, 1], [], []>} : vector<16x32xbf16>, vector<32x128xbf16>, vector<16x128xf32> -> vector<16x128xf32>
    %9 = arith.addf %6, %8 : vector<16x128xf32>
    %10 = vector.extract_strided_slice %0 {offsets = [0, 0], sizes = [1, 128], strides = [1, 1]} : vector<3x128xf32> to vector<1x128xf32>
    %11 = vector.broadcast %10 : vector<1x128xf32> to vector<16x128xf32>
    %12 = arith.addf %9, %11 : vector<16x128xf32>
    %cst_10 = arith.constant 0.000000e+00 : f32
    %13 = vector.broadcast %cst_10 : f32 to vector<16x128xf32>
    %14 = arith.maximumf %12, %13 : vector<16x128xf32>
    %15 = arith.truncf %14 : vector<16x128xf32> to vector<16x128xbf16>
    %c0_11 = arith.constant 0 : index
    %c0_12 = arith.constant 0 : index
    %16 = vector.load %arg5[%c0_11, %c0_12] : memref<128x128xbf16, #tpu.memory_space<vmem>>, vector<128x128xbf16>
    %cst_13 = arith.constant dense<0.000000e+00> : vector<16x128xf32>
    %17 = tpu.matmul %15, %16, %cst_13 {dimension_numbers = #tpu.dot_dimension_numbers<[1], [0], [0], [1], [0, 0, 1, 1], [], []>} : vector<16x128xbf16>, vector<128x128xbf16>, vector<16x128xf32> -> vector<16x128xf32>
    %18 = vector.extract_strided_slice %0 {offsets = [1, 0], sizes = [1, 128], strides = [1, 1]} : vector<3x128xf32> to vector<1x128xf32>
    %19 = vector.broadcast %18 : vector<1x128xf32> to vector<16x128xf32>
    %20 = arith.addf %17, %19 : vector<16x128xf32>
    %cst_14 = arith.constant 0.000000e+00 : f32
    %21 = vector.broadcast %cst_14 : f32 to vector<16x128xf32>
    %22 = arith.maximumf %20, %21 : vector<16x128xf32>
    %23 = arith.truncf %22 : vector<16x128xf32> to vector<16x128xbf16>
    %c0_15 = arith.constant 0 : index
    %c0_16 = arith.constant 0 : index
    %24 = vector.load %arg6[%c0_15, %c0_16] : memref<128x128xbf16, #tpu.memory_space<vmem>>, vector<128x128xbf16>
    %cst_17 = arith.constant dense<0.000000e+00> : vector<16x128xf32>
    %25 = tpu.matmul %23, %24, %cst_17 {dimension_numbers = #tpu.dot_dimension_numbers<[1], [0], [0], [1], [0, 0, 1, 1], [], []>} : vector<16x128xbf16>, vector<128x128xbf16>, vector<16x128xf32> -> vector<16x128xf32>
    %26 = vector.extract_strided_slice %0 {offsets = [2, 0], sizes = [1, 128], strides = [1, 1]} : vector<3x128xf32> to vector<1x128xf32>
    %27 = vector.broadcast %26 : vector<1x128xf32> to vector<16x128xf32>
    %28 = arith.addf %25, %27 : vector<16x128xf32>
    %cst_18 = arith.constant 0.000000e+00 : f32
    %29 = vector.broadcast %cst_18 : f32 to vector<16x128xf32>
    %30 = arith.maximumf %28, %29 : vector<16x128xf32>
    %c0_19 = arith.constant 0 : index
    %c0_20 = arith.constant 0 : index
    %31 = vector.load %arg8[%c0_19, %c0_20] : memref<1x128xf32, #tpu.memory_space<vmem>>, vector<1x128xf32>
    "tpu.trace_start"() <{level = 10 : i32, message = "oh,bh->ob"}> : () -> ()
    %cst_21 = arith.constant dense<0.000000e+00> : vector<1x16xf32>
    %32 = tpu.matmul %31, %30, %cst_21 {dimension_numbers = #tpu.dot_dimension_numbers<[1], [1], [0], [0], [0, 0, 1, 0], [], []>} : vector<1x128xf32>, vector<16x128xf32>, vector<1x16xf32> -> vector<1x16xf32>
    "tpu.trace_stop"() : () -> ()
    %c0_22 = arith.constant 0 : index
    %33 = memref.load %arg9[%c0_22] : memref<1xf32, #tpu.memory_space<smem>>
    %34 = vector.broadcast %33 : f32 to vector<1x16xf32>
    %35 = arith.addf %32, %34 : vector<1x16xf32>
    %cst_23 = arith.constant 0.000000e+00 : f32
    %36 = vector.broadcast %cst_23 : f32 to vector<1x16xf32>
    %37 = arith.subf %36, %35 : vector<1x16xf32>
    %38 = math.exp %37 : vector<1x16xf32>
    %cst_24 = arith.constant 1.000000e+00 : f32
    %39 = vector.broadcast %cst_24 : f32 to vector<1x16xf32>
    %40 = arith.addf %39, %38 : vector<1x16xf32>
    %cst_25 = arith.constant 1.000000e+00 : f32
    %41 = vector.broadcast %cst_25 : f32 to vector<1x16xf32>
    %42 = arith.divf %41, %40 : vector<1x16xf32>
    %43 = vector.shape_cast %42 : vector<1x16xf32> to vector<1x1x16xf32>
    %c0_26 = arith.constant 0 : index
    %c0_27 = arith.constant 0 : index
    %c0_28 = arith.constant 0 : index
    %44 = vector.load %arg10[%c0_26, %c0_27, %c0_28] : memref<1x1x16xf32, #tpu.memory_space<vmem>>, vector<1x1x16xf32>
    tpu.vector_store %arg10[%c0_26, %c0_27, %c0_28], %43 {strides = array<i32>} : memref<1x1x16xf32, #tpu.memory_space<vmem>>, vector<1x1x16xf32>,
    return
  }
  func.func @transform_0(%arg0: i32) -> (i32, i32) {
    %c0_i32 = arith.constant 0 : i32
    %c0_i32_0 = arith.constant 0 : i32
    return %arg0, %c0_i32 : i32, i32
  }
  func.func @transform_1(%arg0: i32) -> (i32, i32) {
    %c0_i32 = arith.constant 0 : i32
    %c0_i32_0 = arith.constant 0 : i32
    return %arg0, %c0_i32 : i32, i32
  }
  func.func @transform_2(%arg0: i32) -> (i32, i32) {
    %c0_i32 = arith.constant 0 : i32
    %c0_i32_0 = arith.constant 0 : i32
    %c0_i32_1 = arith.constant 0 : i32
    return %c0_i32, %c0_i32_0 : i32, i32
  }
  func.func @transform_3(%arg0: i32) -> (i32, i32) {
    %c0_i32 = arith.constant 0 : i32
    %c0_i32_0 = arith.constant 0 : i32
    %c0_i32_1 = arith.constant 0 : i32
    return %c0_i32, %c0_i32_0 : i32, i32
  }
  func.func @transform_4(%arg0: i32) -> (i32, i32) {
    %c0_i32 = arith.constant 0 : i32
    %c0_i32_0 = arith.constant 0 : i32
    %c0_i32_1 = arith.constant 0 : i32
    return %c0_i32, %c0_i32_0 : i32, i32
  }
  func.func @transform_5(%arg0: i32) -> (i32, i32) {
    %c0_i32 = arith.constant 0 : i32
    %c0_i32_0 = arith.constant 0 : i32
    %c0_i32_1 = arith.constant 0 : i32
    return %c0_i32, %c0_i32_0 : i32, i32
  }
  func.func @transform_6(%arg0: i32) -> (i32, i32) {
    %c0_i32 = arith.constant 0 : i32
    %c0_i32_0 = arith.constant 0 : i32
    %c0_i32_1 = arith.constant 0 : i32
    return %c0_i32, %c0_i32_0 : i32, i32
  }
  func.func @transform_7(%arg0: i32) -> (i32, i32) {
    %c0_i32 = arith.constant 0 : i32
    %c0_i32_0 = arith.constant 0 : i32
    %c0_i32_1 = arith.constant 0 : i32
    return %c0_i32, %c0_i32_0 : i32, i32
  }
  func.func @transform_8(%arg0: i32) -> i32 {
    %c0_i32 = arith.constant 0 : i32
    %c0_i32_0 = arith.constant 0 : i32
    return %c0_i32 : i32
  }
  func.func @transform_9(%arg0: i32) -> (i32, i32, i32) {
    %c0_i32 = arith.constant 0 : i32
    %c0_i32_0 = arith.constant 0 : i32
    %c0_i32_1 = arith.constant 0 : i32
    return %arg0, %c0_i32, %c0_i32_0 : i32, i32, i32
  }
}

</mosaic_0001>

<llo_original>
// kernel: tpu_custom_call.1
$region0: #{tpu_custom_call.1}
  #allocation0 [shape = 'u32[]', space=smem, size = 0x4, offset = 0x4, fixed_abs, tag = 'smem constant byte address 0x4 - core index']
  #allocation1 [shape = 'u32[144,128]{1,0:T(1,128)}', space=vmem, size = 0x12000, scoped, tag = 'internal scratch']
  #allocation2 [shape = 'f32[1]{0:T(128)S(6)}', space=smem, size = 0x200, scoped, tag = 'scoped memory for tpu_custom_call.1']
  %s0 = inlined_call_operand.vmem [shape: f32[48,32], index: 0, kind: input, shape index: {}]
  %s1 = inlined_call_operand.vmem [shape: f32[48,32], index: 1, kind: input, shape index: {}]
  %s2 = inlined_call_operand.hbm [shape: bf16[32,128], index: 2, kind: input, shape index: {}]
  %s3 = inlined_call_operand.hbm [shape: bf16[32,128], index: 3, kind: input, shape index: {}]
  %s4 = inlined_call_operand.vmem [shape: bf16[128,128], index: 4, kind: input, shape index: {}]
  %s5 = inlined_call_operand.vmem [shape: bf16[128,128], index: 5, kind: input, shape index: {}]
  %s6 = inlined_call_operand.vmem [shape: f32[3,128], index: 6, kind: input, shape index: {}]
  %s7 = inlined_call_operand.vmem [shape: f32[1,128], index: 7, kind: input, shape index: {}]
  %s8 = inlined_call_operand.<no memory space> [shape: f32[1], index: 8, kind: input, shape index: {}]
  %s9 = inlined_call_operand.hbm [shape: f32[3,1,16], index: 9, kind: output, shape index: {}]
  %s10 = sld [smem:[#allocation0]]
  $region77: #{tpu_custom_call.1} parent=0
    _
  %s12 = ssub.s32 1, %s10
  %s13 = scalar_select 0, %s12, %s10
  %14 = sst [smem:[#allocation2]] %s8
  $region1: #{tpu_custom_call.1} parent=0
    #allocation3 [shape = 'u8[8192]{0}', space=vmem, size = 0x2000, scoped, tag = 'input window, operand 2, single buffered']
    #allocation4 [shape = 's32[2]{0}', space=sflag, size = 0x8, scoped, tag = 'scoped memory for tpu_custom_call.1']
    #allocation5 [shape = 's32[2]{0}', space=sflag, size = 0x8, scoped, tag = 'scoped memory for tpu_custom_call.1']
    #allocation6 [shape = 'u8[8192]{0}', space=vmem, size = 0x2000, scoped, tag = 'input window, operand 3, single buffered']
    #allocation7 [shape = 's32[1]{0}', space=sflag, size = 0x4, scoped, tag = 'scoped memory for tpu_custom_call.1']
    #allocation8 [shape = 'u8[1024]{0}', space=vmem, size = 0x400, scoped, tag = 'output window, operand 0']
    %15 = vsyncpa [#allocation4], 0
    %16 = vsyncpa [#allocation7], 0
    %17 = vsyncpa [#allocation5], 0
    %s18 = scalar_lea.sflag [#allocation5], 1
    %19 = vsyncpa %s18, 0
    loop: start=0, step=1, limit=5
    $region2: #{tpu_custom_call.1} parent=1 // loop_pre_header
      _
    $region3: #{tpu_custom_call.1} parent=1 // loop_header
      %s21 = sphi 0, %s25
      %p22 = scmp.ge.s32.totalorder %s21, 5
      %s31 = sphi 0, %s33
      %s34 = sphi 0, %s31
      %s35 = sphi 0, %s34
      %s51 = sphi 0, %s35
      %s57 = sphi 0, %s59
      %s60 = sphi 0, %s57
      %s61 = sphi 0, %s60
      %s77 = sphi 0, %s61
      %s81 = sphi 0, %s81
      %s83 = sphi 0, %s81
      %s84 = sphi 0, %s83
      %s98 = sphi 0, %s84
      %s102 = sphi 0, %s102
      %s104 = sphi 0, %s102
      %s105 = sphi 0, %s104
      %s119 = sphi 0, %s105
      %s123 = sphi 0, %s123
      %s125 = sphi 0, %s123
      %s126 = sphi 0, %s125
      %s140 = sphi 0, %s126
      %s144 = sphi 0, %s144
      %s146 = sphi 0, %s144
      %s147 = sphi 0, %s146
      %s161 = sphi 0, %s147
      %s165 = sphi 0, %s165
      %s167 = sphi 0, %s165
      %s168 = sphi 0, %s167
      %s182 = sphi 0, %s168
      %s186 = sphi 0, %s186
      %s188 = sphi 0, %s186
      %s189 = sphi 0, %s188
      %s203 = sphi 0, %s189
      %s207 = sphi 0, %s207
      %s209 = sphi 0, %s207
      %s210 = sphi 0, %s209
      %s224 = sphi 0, %s210
      %s230 = sphi 0, %s232
      %s233 = sphi 0, %s230
      %s234 = sphi 0, %s233
      %s250 = sphi 0, %s234
    $region4: #{tpu_custom_call.1} parent=1 // loop_header_branch
      %24 = sbr.rel (%p22) target = $region8
    $region5: #{tpu_custom_call.1} parent=1 // loop_body
      %s26 = ssub.s32 %s21, 1
      %s27 = ssub.s32 %s21, 2
      %s28 = sadd.s32 %s21, 1
      %s29 = ssub.s32 %s21, %s28
      %p30 = scmp.eq.s32.totalorder %s29, 0
      %s32 = sadd.s32 %s31, 1
      %s33 = scalar_select %p30, %s31, %s32
      %p36 = pneg %p30
      %p37 = scmp.eq.s32.totalorder %s21, 2
      %p38 = por %p36, %p37
      %p39 = scmp.ne.s32.totalorder %s31, %s34
      %p40 = scmp.eq.s32.totalorder %s21, 0
      %p41 = por %p39, %p40
      %p42 = scmp.ne.s32.totalorder %s31, %s34
      %p43 = scmp.eq.s32.totalorder %s26, 2
      %p44 = por %p42, %p43
      %p45 = scmp.ne.s32.totalorder %s34, %s35
      %p46 = scmp.eq.s32.totalorder %s26, 0
      %p47 = por %p45, %p46
      %p48 = scmp.ne.s32.totalorder %s34, %s35
      %p49 = scmp.eq.s32.totalorder %s27, 2
      %p50 = por %p48, %p49
      %p52 = scmp.ne.s32.totalorder %s35, %s51
      %p53 = scmp.eq.s32.totalorder %s27, 0
      %p54 = por %p52, %p53
      %s55 = ssub.s32 %s21, %s28
      %p56 = scmp.eq.s32.totalorder %s55, 0
      %s58 = sadd.s32 %s57, 1
      %s59 = scalar_select %p56, %s57, %s58
      %p62 = pneg %p56
      %p63 = scmp.eq.s32.totalorder %s21, 2
      %p64 = por %p62, %p63
      %p65 = scmp.ne.s32.totalorder %s57, %s60
      %p66 = scmp.eq.s32.totalorder %s21, 0
      %p67 = por %p65, %p66
      %p68 = scmp.ne.s32.totalorder %s57, %s60
      %p69 = scmp.eq.s32.totalorder %s26, 2
      %p70 = por %p68, %p69
      %p71 = scmp.ne.s32.totalorder %s60, %s61
      %p72 = scmp.eq.s32.totalorder %s26, 0
      %p73 = por %p71, %p72
      %p74 = scmp.ne.s32.totalorder %s60, %s61
      %p75 = scmp.eq.s32.totalorder %s27, 2
      %p76 = por %p74, %p75
      %p78 = scmp.ne.s32.totalorder %s61, %s77
      %p79 = scmp.eq.s32.totalorder %s27, 0
      %p80 = por %p78, %p79
      %s82 = sadd.s32 %s81, 1
      %p85 = scmp.eq.s32.totalorder %s21, 2
      %p86 = scmp.ne.s32.totalorder %s81, %s83
      %p87 = scmp.eq.s32.totalorder %s21, 0
      %p88 = por %p86, %p87
      %p89 = scmp.ne.s32.totalorder %s81, %s83
      %p90 = scmp.eq.s32.totalorder %s26, 2
      %p91 = por %p89, %p90
      %p92 = scmp.ne.s32.totalorder %s83, %s84
      %p93 = scmp.eq.s32.totalorder %s26, 0
      %p94 = por %p92, %p93
      %p95 = scmp.ne.s32.totalorder %s83, %s84
      %p96 = scmp.eq.s32.totalorder %s27, 2
      %p97 = por %p95, %p96
      %p99 = scmp.ne.s32.totalorder %s84, %s98
      %p100 = scmp.eq.s32.totalorder %s27, 0
      %p101 = por %p99, %p100
      %s103 = sadd.s32 %s102, 1
      %p106 = scmp.eq.s32.totalorder %s21, 2
      %p107 = scmp.ne.s32.totalorder %s102, %s104
      %p108 = scmp.eq.s32.totalorder %s21, 0
      %p109 = por %p107, %p108
      %p110 = scmp.ne.s32.totalorder %s102, %s104
      %p111 = scmp.eq.s32.totalorder %s26, 2
      %p112 = por %p110, %p111
      %p113 = scmp.ne.s32.totalorder %s104, %s105
      %p114 = scmp.eq.s32.totalorder %s26, 0
      %p115 = por %p113, %p114
      %p116 = scmp.ne.s32.totalorder %s104, %s105
      %p117 = scmp.eq.s32.totalorder %s27, 2
      %p118 = por %p116, %p117
      %p120 = scmp.ne.s32.totalorder %s105, %s119
      %p121 = scmp.eq.s32.totalorder %s27, 0
      %p122 = por %p120, %p121
      %s124 = sadd.s32 %s123, 1
      %p127 = scmp.eq.s32.totalorder %s21, 2
      %p128 = scmp.ne.s32.totalorder %s123, %s125
      %p129 = scmp.eq.s32.totalorder %s21, 0
      %p130 = por %p128, %p129
      %p131 = scmp.ne.s32.totalorder %s123, %s125
      %p132 = scmp.eq.s32.totalorder %s26, 2
      %p133 = por %p131, %p132
      %p134 = scmp.ne.s32.totalorder %s125, %s126
      %p135 = scmp.eq.s32.totalorder %s26, 0
      %p136 = por %p134, %p135
      %p137 = scmp.ne.s32.totalorder %s125, %s126
      %p138 = scmp.eq.s32.totalorder %s27, 2
      %p139 = por %p137, %p138
      %p141 = scmp.ne.s32.totalorder %s126, %s140
      %p142 = scmp.eq.s32.totalorder %s27, 0
      %p143 = por %p141, %p142
      %s145 = sadd.s32 %s144, 1
      %p148 = scmp.eq.s32.totalorder %s21, 2
      %p149 = scmp.ne.s32.totalorder %s144, %s146
      %p150 = scmp.eq.s32.totalorder %s21, 0
      %p151 = por %p149, %p150
      %p152 = scmp.ne.s32.totalorder %s144, %s146
      %p153 = scmp.eq.s32.totalorder %s26, 2
      %p154 = por %p152, %p153
      %p155 = scmp.ne.s32.totalorder %s146, %s147
      %p156 = scmp.eq.s32.totalorder %s26, 0
      %p157 = por %p155, %p156
      %p158 = scmp.ne.s32.totalorder %s146, %s147
      %p159 = scmp.eq.s32.totalorder %s27, 2
      %p160 = por %p158, %p159
      %p162 = scmp.ne.s32.totalorder %s147, %s161
      %p163 = scmp.eq.s32.totalorder %s27, 0
      %p164 = por %p162, %p163
      %s166 = sadd.s32 %s165, 1
      %p169 = scmp.eq.s32.totalorder %s21, 2
      %p170 = scmp.ne.s32.totalorder %s165, %s167
      %p171 = scmp.eq.s32.totalorder %s21, 0
      %p172 = por %p170, %p171
      %p173 = scmp.ne.s32.totalorder %s165, %s167
      %p174 = scmp.eq.s32.totalorder %s26, 2
      %p175 = por %p173, %p174
      %p176 = scmp.ne.s32.totalorder %s167, %s168
      %p177 = scmp.eq.s32.totalorder %s26, 0
      %p178 = por %p176, %p177
      %p179 = scmp.ne.s32.totalorder %s167, %s168
      %p180 = scmp.eq.s32.totalorder %s27, 2
      %p181 = por %p179, %p180
      %p183 = scmp.ne.s32.totalorder %s168, %s182
      %p184 = scmp.eq.s32.totalorder %s27, 0
      %p185 = por %p183, %p184
      %s187 = sadd.s32 %s186, 1
      %p190 = scmp.eq.s32.totalorder %s21, 2
      %p191 = scmp.ne.s32.totalorder %s186, %s188
      %p192 = scmp.eq.s32.totalorder %s21, 0
      %p193 = por %p191, %p192
      %p194 = scmp.ne.s32.totalorder %s186, %s188
      %p195 = scmp.eq.s32.totalorder %s26, 2
      %p196 = por %p194, %p195
      %p197 = scmp.ne.s32.totalorder %s188, %s189
      %p198 = scmp.eq.s32.totalorder %s26, 0
      %p199 = por %p197, %p198
      %p200 = scmp.ne.s32.totalorder %s188, %s189
      %p201 = scmp.eq.s32.totalorder %s27, 2
      %p202 = por %p200, %p201
      %p204 = scmp.ne.s32.totalorder %s189, %s203
      %p205 = scmp.eq.s32.totalorder %s27, 0
      %p206 = por %p204, %p205
      %s208 = sadd.s32 %s207, 1
      %p211 = scmp.eq.s32.totalorder %s21, 2
      %p212 = scmp.ne.s32.totalorder %s207, %s209
      %p213 = scmp.eq.s32.totalorder %s21, 0
      %p214 = por %p212, %p213
      %p215 = scmp.ne.s32.totalorder %s207, %s209
      %p216 = scmp.eq.s32.totalorder %s26, 2
      %p217 = por %p215, %p216
      %p218 = scmp.ne.s32.totalorder %s209, %s210
      %p219 = scmp.eq.s32.totalorder %s26, 0
      %p220 = por %p218, %p219
      %p221 = scmp.ne.s32.totalorder %s209, %s210
      %p222 = scmp.eq.s32.totalorder %s27, 2
      %p223 = por %p221, %p222
      %p225 = scmp.ne.s32.totalorder %s210, %s224
      %p226 = scmp.eq.s32.totalorder %s27, 0
      %p227 = por %p225, %p226
      %s228 = ssub.s32 %s21, %s28
      %p229 = scmp.eq.s32.totalorder %s228, 0
      %s231 = sadd.s32 %s230, 1
      %s232 = scalar_select %p229, %s230, %s231
      %p235 = pneg %p229
      %p236 = scmp.eq.s32.totalorder %s21, 2
      %p237 = por %p235, %p236
      %p238 = scmp.ne.s32.totalorder %s230, %s233
      %p239 = scmp.eq.s32.totalorder %s21, 0
      %p240 = por %p238, %p239
      %p241 = scmp.ne.s32.totalorder %s230, %s233
      %p242 = scmp.eq.s32.totalorder %s26, 2
      %p243 = por %p241, %p242
      %p244 = scmp.ne.s32.totalorder %s233, %s234
      %p245 = scmp.eq.s32.totalorder %s26, 0
      %p246 = por %p244, %p245
      %p247 = scmp.ne.s32.totalorder %s233, %s234
      %p248 = scmp.eq.s32.totalorder %s27, 2
      %p249 = por %p247, %p248
      %p251 = scmp.ne.s32.totalorder %s234, %s250
      %p252 = scmp.eq.s32.totalorder %s27, 0
      %p253 = por %p251, %p252
      %p254 = scmp.le.s32.totalorder 1, %s21
      %p255 = scmp.lt.s32.totalorder %s21, 4
      %p256 = pnand %p254, %p255
      %p257 = pneg %p256
      // Predicated region
      $region9: #{tpu_custom_call.1} parent=5 // pred_check
        _
      $region10: #{tpu_custom_call.1} parent=5 // pred_check_branch
        %259 = sbr.rel (%p256) target = $region12
      $region11: #{tpu_custom_call.1} parent=5 // pred_region
        %s260 = ssub.s32 %s21, 1
        // Predicated region
        $region13: #{tpu_custom_call.1} parent=11 // pred_check
          %p261 = pneg %p94
        $region14: #{tpu_custom_call.1} parent=11 // pred_check_branch
          %263 = sbr.rel (%p261) target = $region16
        $region15: #{tpu_custom_call.1} parent=11 // pred_region
          %s265 = ssub.s32 256, 256
          %266 = vsyncadd [#allocation4], %s265
          %s267 = sshll.u32 [#allocation3], 4
          %s268 = int_to_ptr.vmem [resolvable:$true] %s267
          %273 = dma.hbm_to_vmem [thread:$0]  %s2, 256, %s268, [#allocation4], 64, 64, 4
        $region16: #{tpu_custom_call.1} parent=11 // pred_fallthru
          _
        // Predicated region
        $region17: #{tpu_custom_call.1} parent=11 // pred_check
          %p274 = pneg %p115
        $region18: #{tpu_custom_call.1} parent=11 // pred_check_branch
          %276 = sbr.rel (%p274) target = $region20
        $region19: #{tpu_custom_call.1} parent=11 // pred_region
          %s278 = ssub.s32 256, 256
          %279 = vsyncadd [#allocation7], %s278
          %s280 = sshll.u32 [#allocation6], 4
          %s281 = int_to_ptr.vmem [resolvable:$true] %s280
          %286 = dma.hbm_to_vmem [thread:$0]  %s3, 256, %s281, [#allocation7], 64, 64, 4
        $region20: #{tpu_custom_call.1} parent=11 // pred_fallthru
          _
        // Predicated region
        $region21: #{tpu_custom_call.1} parent=11 // pred_check
          %p287 = pneg %p136
        $region22: #{tpu_custom_call.1} parent=11 // pred_check_branch
          %289 = sbr.rel (%p287) target = $region24
        $region23: #{tpu_custom_call.1} parent=11 // pred_region
          _
        $region24: #{tpu_custom_call.1} parent=11 // pred_fallthru
          _
        // Predicated region
        $region25: #{tpu_custom_call.1} parent=11 // pred_check
          %p290 = pneg %p157
        $region26: #{tpu_custom_call.1} parent=11 // pred_check_branch
          %292 = sbr.rel (%p290) target = $region28
        $region27: #{tpu_custom_call.1} parent=11 // pred_region
          _
        $region28: #{tpu_custom_call.1} parent=11 // pred_fallthru
          _
        // Predicated region
        $region29: #{tpu_custom_call.1} parent=11 // pred_check
          %p293 = pneg %p178
        $region30: #{tpu_custom_call.1} parent=11 // pred_check_branch
          %295 = sbr.rel (%p293) target = $region32
        $region31: #{tpu_custom_call.1} parent=11 // pred_region
          _
        $region32: #{tpu_custom_call.1} parent=11 // pred_fallthru
          _
        // Predicated region
        $region33: #{tpu_custom_call.1} parent=11 // pred_check
          %p296 = pneg %p199
        $region34: #{tpu_custom_call.1} parent=11 // pred_check_branch
          %298 = sbr.rel (%p296) target = $region36
        $region35: #{tpu_custom_call.1} parent=11 // pred_region
          _
        $region36: #{tpu_custom_call.1} parent=11 // pred_fallthru
          _
        // Predicated region
        $region37: #{tpu_custom_call.1} parent=11 // pred_check
          %p299 = pneg %p220
        $region38: #{tpu_custom_call.1} parent=11 // pred_check_branch
          %301 = sbr.rel (%p299) target = $region40
        $region39: #{tpu_custom_call.1} parent=11 // pred_region
          _
        $region40: #{tpu_custom_call.1} parent=11 // pred_fallthru
          _
      $region12: #{tpu_custom_call.1} parent=5 // pred_fallthru
        _
      %p302 = scmp.lt.s32.totalorder %s21, 3
      // Predicated region
      $region41: #{tpu_custom_call.1} parent=5 // pred_check
        %p303 = pneg %p302
      $region42: #{tpu_custom_call.1} parent=5 // pred_check_branch
        %305 = sbr.rel (%p303) target = $region44
      $region43: #{tpu_custom_call.1} parent=5 // pred_region
        // Predicated region
        $region45: #{tpu_custom_call.1} parent=43 // pred_check
          %p306 = pneg %p41
        $region46: #{tpu_custom_call.1} parent=43 // pred_check_branch
          %308 = sbr.rel (%p306) target = $region48
        $region47: #{tpu_custom_call.1} parent=43 // pred_region
          %s309 = smul.u32 2, %s21
          %p310 = scmp.lt.s32.totalorder %s309, 5
          %s311 = scalar_select %p310, %s309, 5
          %s312 = smul.addr %s311, 8
          %s313 = scalar_lea.vmem %s0, %s312
          %s314 = smul.u32 2, %s21
        $region48: #{tpu_custom_call.1} parent=43 // pred_fallthru
          _
        // Predicated region
        $region49: #{tpu_custom_call.1} parent=43 // pred_check
          %p315 = pneg %p67
        $region50: #{tpu_custom_call.1} parent=43 // pred_check_branch
          %317 = sbr.rel (%p315) target = $region52
        $region51: #{tpu_custom_call.1} parent=43 // pred_region
          %s318 = smul.u32 2, %s21
          %p319 = scmp.lt.s32.totalorder %s318, 5
          %s320 = scalar_select %p319, %s318, 5
          %s321 = smul.addr %s320, 8
          %s322 = scalar_lea.vmem %s1, %s321
          %s323 = smul.u32 2, %s21
        $region52: #{tpu_custom_call.1} parent=43 // pred_fallthru
          _
      $region44: #{tpu_custom_call.1} parent=5 // pred_fallthru
        _
      %p324 = scmp.le.s32.totalorder 1, %s21
      %p325 = scmp.lt.s32.totalorder %s21, 4
      %p326 = pnand %p324, %p325
      %p327 = pneg %p326
      // Predicated region
      $region53: #{tpu_custom_call.1} parent=5 // pred_check
        _
      $region54: #{tpu_custom_call.1} parent=5 // pred_check_branch
        %329 = sbr.rel (%p326) target = $region56
      $region55: #{tpu_custom_call.1} parent=5 // pred_region
        %s330 = ssub.s32 %s21, 1
        // Predicated region
        $region57: #{tpu_custom_call.1} parent=55 // pred_check
          %p331 = pneg %p94
        $region58: #{tpu_custom_call.1} parent=55 // pred_check_branch
          %333 = sbr.rel (%p331) target = $region60
        $region59: #{tpu_custom_call.1} parent=55 // pred_region
          %334 = dma.done [#allocation4], 256
        $region60: #{tpu_custom_call.1} parent=55 // pred_fallthru
          _
        // Predicated region
        $region61: #{tpu_custom_call.1} parent=55 // pred_check
          %p335 = pneg %p115
        $region62: #{tpu_custom_call.1} parent=55 // pred_check_branch
          %337 = sbr.rel (%p335) target = $region64
        $region63: #{tpu_custom_call.1} parent=55 // pred_region
          %338 = dma.done [#allocation7], 256
        $region64: #{tpu_custom_call.1} parent=55 // pred_fallthru
          _
        %s339 = smul.u32 2, %s26
        %p340 = scmp.lt.s32.totalorder %s339, 5
        %s341 = scalar_select %p340, %s339, 5
        %s342 = smul.addr %s341, 8
        %s343 = scalar_lea.vmem %s0, %s342
        %p344 = pneg %p47
        %p345 = pneg %p44
        %s346 = smul.u32 2, %s26
        %p347 = scmp.lt.s32.totalorder %s346, 5
        %s348 = scalar_select %p347, %s346, 5
        %s349 = smul.addr %s348, 8
        %s350 = scalar_lea.vmem %s1, %s349
        %p351 = pneg %p73
        %p352 = pneg %p70
        %p353 = pneg %p94
        %p354 = pneg %p91
        %p355 = pneg %p115
        %p356 = pneg %p112
        %p357 = pneg %p136
        %p358 = pneg %p133
        %p359 = pneg %p157
        %p360 = pneg %p154
        %p361 = pneg %p178
        %p362 = pneg %p175
        %p363 = pneg %p199
        %p364 = pneg %p196
        %p365 = pneg %p220
        %p366 = pneg %p217
        %p367 = pneg %p246
        %p368 = pneg %p243
        %s369 = sand.u32 %s233, 1
        %s370 = scalar_lea.sflag [#allocation5], %s369
        %s371 = sand.u32 %s233, 1
        %s372 = scalar_lea.vmem [#allocation8], %s371
        %s373 = smul.u32 2, %s26
        %p374 = scmp.lt.s32.totalorder %s373, 5
        %s375 = scalar_select %p374, %s373, 5
        %s376 = smul.addr %s375, 8
        %s377 = scalar_lea.vmem %s0, %s376
        %s378 = smul.u32 2, %s26
        %s379 = smul.u32 2, %s26
        %p380 = scmp.lt.s32.totalorder %s379, 5
        %s381 = scalar_select %p380, %s379, 5
        %s382 = smul.addr %s381, 8
        %s383 = scalar_lea.vmem %s1, %s382
        %s384 = smul.u32 2, %s26
        %v386 = vld [vmem:[%s6] sm:$0x7]
        %v387 = vld [vmem:[%s377] sm:$0xff]
        %v388 = vld [vmem:[%s377 + $0x8] sm:$0xff]
        %v389 = vpack.c.bf16 %v388, %v387
        %v390 = vld [vmem:[%s383] sm:$0xff]
        %v391 = vld [vmem:[%s383 + $0x8] sm:$0xff]
        %v392 = vpack.c.bf16 %v391, %v390
        %v393 = vld [vmem:[#allocation3] sm:$0xf]
        %v394 = vld [vmem:[#allocation3 + $0x4] sm:$0xf]
        %v395 = vld [vmem:[#allocation3 + $0x8] sm:$0xf]
        %v396 = vld [vmem:[#allocation3 + $0xc] sm:$0xf]
        %v397 = vld [vmem:[#allocation6] sm:$0xf]
        %v398 = vld [vmem:[#allocation6 + $0x4] sm:$0xf]
        %v399 = vld [vmem:[#allocation6 + $0x8] sm:$0xf]
        %v400 = vld [vmem:[#allocation6 + $0xc] sm:$0xf]
        %v405 = vunpack.c.l.b16 %v397
        %v406 = vunpack.c.l.b16 %v398
        %v407 = vunpack.c.l.b16 %v399
        %v408 = vunpack.c.l.b16 %v400
        %v409 = vpack.c.b16 %v406, %v405
        %v410 = vpack.c.b16 %v408, %v407
        %vm413 = vcmask 261120
        %v415 = vsel %vm413, %v392, 0
        %417 = vmatprep.subr.bf16.mxu0 0
        %418 = vmatpush1.bf16.msra.mxu0 %v409
        %419 = vmatprep.subr.bf16.mxu0 0
        %420 = vmatpush1.bf16.msra.mxu0 %v410
        %421 = vmatprep.subr.bf16.mxu0 0
        %422 = vmatpush1.bf16.msra.mxu0 0
        %423 = vmatprep.subr.bf16.mxu0 0
        %424 = vmatpush1.bf16.msra.mxu0 0
        %425 = vmatprep.subr.bf16.mxu0 0
        %426 = vmatpush1.bf16.msra.mxu0 0
        %427 = vmatprep.subr.bf16.mxu0 0
        %428 = vmatpush1.bf16.msra.mxu0 0
        %429 = vmatprep.subr.bf16.mxu0 0
        %430 = vmatpush1.bf16.msra.mxu0 0
        %431 = vmatprep.subr.bf16.mxu0 0
        %432 = vmatpush1.bf16.msra.mxu0 0
        %433 = vmatprep.subr.bf16.mxu0 0
        %434 = vmatpush1.bf16.msra.mxu0 0
        %435 = vmatprep.subr.bf16.mxu0 0
        %436 = vmatpush1.bf16.msra.mxu0 0
        %437 = vmatprep.subr.bf16.mxu0 0
        %438 = vmatpush1.bf16.msra.mxu0 0
        %439 = vmatprep.subr.bf16.mxu0 0
        %440 = vmatpush1.bf16.msra.mxu0 0
        %441 = vmatprep.subr.bf16.mxu0 0
        %442 = vmatpush1.bf16.msra.mxu0 0
        %443 = vmatprep.subr.bf16.mxu0 0
        %444 = vmatpush1.bf16.msra.mxu0 0
        %445 = vmatprep.subr.bf16.mxu0 0
        %446 = vmatpush1.bf16.msra.mxu0 0
        %447 = vmatprep.subr.bf16.mxu0 0
        %448 = vmatpush1.bf16.msra.mxu0 0
        %449 = vmatprep.mubr.bf16.mxu0 0
        %450 = vmatmul.mubr.bf16.gmra.mrb[0].mxu0 %v415
        %v451 = vpop.f32.mrb[0].mxu0
        %v452 = vadd.f32 0.0, %v451
        %v453 = vpop.f32.mrb[0].mxu0
        %v454 = vpop.f32.mrb[0].mxu0
        %v455 = vadd.f32 0.0, %v454
        %v456 = vpop.f32.mrb[0].mxu0
        %457 = vdwg.mxu0
        %v462 = vunpack.c.l.b16 %v393
        %v463 = vunpack.c.l.b16 %v394
        %v464 = vunpack.c.l.b16 %v395
        %v465 = vunpack.c.l.b16 %v396
        %v466 = vpack.c.b16 %v463, %v462
        %v467 = vpack.c.b16 %v465, %v464
        %v471 = vsel %vm413, %v389, 0
        %473 = vmatprep.subr.bf16.mxu0 0
        %474 = vmatpush1.bf16.msra.mxu0 %v466
        %475 = vmatprep.subr.bf16.mxu0 0
        %476 = vmatpush1.bf16.msra.mxu0 %v467
        %477 = vmatprep.subr.bf16.mxu0 0
        %478 = vmatpush1.bf16.msra.mxu0 0
        %479 = vmatprep.subr.bf16.mxu0 0
        %480 = vmatpush1.bf16.msra.mxu0 0
        %481 = vmatprep.subr.bf16.mxu0 0
        %482 = vmatpush1.bf16.msra.mxu0 0
        %483 = vmatprep.subr.bf16.mxu0 0
        %484 = vmatpush1.bf16.msra.mxu0 0
        %485 = vmatprep.subr.bf16.mxu0 0
        %486 = vmatpush1.bf16.msra.mxu0 0
        %487 = vmatprep.subr.bf16.mxu0 0
        %488 = vmatpush1.bf16.msra.mxu0 0
        %489 = vmatprep.subr.bf16.mxu0 0
        %490 = vmatpush1.bf16.msra.mxu0 0
        %491 = vmatprep.subr.bf16.mxu0 0
        %492 = vmatpush1.bf16.msra.mxu0 0
        %493 = vmatprep.subr.bf16.mxu0 0
        %494 = vmatpush1.bf16.msra.mxu0 0
        %495 = vmatprep.subr.bf16.mxu0 0
        %496 = vmatpush1.bf16.msra.mxu0 0
        %497 = vmatprep.subr.bf16.mxu0 0
        %498 = vmatpush1.bf16.msra.mxu0 0
        %499 = vmatprep.subr.bf16.mxu0 0
        %500 = vmatpush1.bf16.msra.mxu0 0
        %501 = vmatprep.subr.bf16.mxu0 0
        %502 = vmatpush1.bf16.msra.mxu0 0
        %503 = vmatprep.subr.bf16.mxu0 0
        %504 = vmatpush1.bf16.msra.mxu0 0
        %505 = vmatprep.mubr.bf16.mxu0 0
        %506 = vmatmul.mubr.bf16.gmra.mrb[0].mxu0 %v471
        %v507 = vpop.f32.mrb[0].mxu0
        %v508 = vadd.f32 %v452, %v507
        %v509 = vpop.f32.mrb[0].mxu0
        %v510 = vpop.f32.mrb[0].mxu0
        %v511 = vadd.f32 %v455, %v510
        %v512 = vpop.f32.mrb[0].mxu0
        %513 = vdwg.mxu0
        %v514 = vlaneseq
        %v515 = vshrl.u32 %v514, 7
        %v516 = vsub.s32 0, %v515
        %v517 = vrot.slane %v386, %v516
        %v518 = vadd.f32 %v508, %v517
        %v519 = vadd.f32 %v511, %v517
        %v520 = vmax.f32 %v518, 0.0
        %v521 = vmax.f32 %v519, 0.0
        %v522 = vpack.c.bf16 %v521, %v520
        %v523 = vld [vmem:[%s4] sm:$0xf]
        %v524 = vld [vmem:[%s4 + $0x4] sm:$0xf]
        %v525 = vld [vmem:[%s4 + $0x8] sm:$0xf]
        %v526 = vld [vmem:[%s4 + $0xc] sm:$0xf]
        %v527 = vld [vmem:[%s4 + $0x10] sm:$0xf]
        %v528 = vld [vmem:[%s4 + $0x14] sm:$0xf]
        %v529 = vld [vmem:[%s4 + $0x18] sm:$0xf]
        %v530 = vld [vmem:[%s4 + $0x1c] sm:$0xf]
        %v531 = vld [vmem:[%s4 + $0x20] sm:$0xf]
        %v532 = vld [vmem:[%s4 + $0x24] sm:$0xf]
        %v533 = vld [vmem:[%s4 + $0x28] sm:$0xf]
        %v534 = vld [vmem:[%s4 + $0x2c] sm:$0xf]
        %v535 = vld [vmem:[%s4 + $0x30] sm:$0xf]
        %v536 = vld [vmem:[%s4 + $0x34] sm:$0xf]
        %v537 = vld [vmem:[%s4 + $0x38] sm:$0xf]
        %v538 = vld [vmem:[%s4 + $0x3c] sm:$0xf]
        %v539 = vlaneseq
        %v540 = vshrl.u32 %v539, 7
        %v541 = vsub.s32 1, %v540
        %v542 = vrot.slane %v386, %v541
        %v559 = vunpack.c.l.b16 %v523
        %v560 = vunpack.c.l.b16 %v524
        %v561 = vunpack.c.l.b16 %v525
        %v562 = vunpack.c.l.b16 %v526
        %v563 = vunpack.c.l.b16 %v527
        %v564 = vunpack.c.l.b16 %v528
        %v565 = vunpack.c.l.b16 %v529
        %v566 = vunpack.c.l.b16 %v530
        %v567 = vunpack.c.l.b16 %v531
        %v568 = vunpack.c.l.b16 %v532
        %v569 = vunpack.c.l.b16 %v533
        %v570 = vunpack.c.l.b16 %v534
        %v571 = vunpack.c.l.b16 %v535
        %v572 = vunpack.c.l.b16 %v536
        %v573 = vunpack.c.l.b16 %v537
        %v574 = vunpack.c.l.b16 %v538
        %v575 = vpack.c.b16 %v560, %v559
        %v576 = vpack.c.b16 %v562, %v561
        %v577 = vpack.c.b16 %v564, %v563
        %v578 = vpack.c.b16 %v566, %v565
        %v579 = vpack.c.b16 %v568, %v567
        %v580 = vpack.c.b16 %v570, %v569
        %v581 = vpack.c.b16 %v572, %v571
        %v582 = vpack.c.b16 %v574, %v573
        %591 = vmatprep.subr.bf16.mxu0 0
        %592 = vmatpush1.bf16.msra.mxu0 %v575
        %593 = vmatprep.subr.bf16.mxu0 0
        %594 = vmatpush1.bf16.msra.mxu0 %v576
        %595 = vmatprep.subr.bf16.mxu0 0
        %596 = vmatpush1.bf16.msra.mxu0 %v577
        %597 = vmatprep.subr.bf16.mxu0 0
        %598 = vmatpush1.bf16.msra.mxu0 %v578
        %599 = vmatprep.subr.bf16.mxu0 0
        %600 = vmatpush1.bf16.msra.mxu0 %v579
        %601 = vmatprep.subr.bf16.mxu0 0
        %602 = vmatpush1.bf16.msra.mxu0 %v580
        %603 = vmatprep.subr.bf16.mxu0 0
        %604 = vmatpush1.bf16.msra.mxu0 %v581
        %605 = vmatprep.subr.bf16.mxu0 0
        %606 = vmatpush1.bf16.msra.mxu0 %v582
        %607 = vmatprep.subr.bf16.mxu0 0
        %608 = vmatpush1.bf16.msra.mxu0 0
        %609 = vmatprep.subr.bf16.mxu0 0
        %610 = vmatpush1.bf16.msra.mxu0 0
        %611 = vmatprep.subr.bf16.mxu0 0
        %612 = vmatpush1.bf16.msra.mxu0 0
        %613 = vmatprep.subr.bf16.mxu0 0
        %614 = vmatpush1.bf16.msra.mxu0 0
        %615 = vmatprep.subr.bf16.mxu0 0
        %616 = vmatpush1.bf16.msra.mxu0 0
        %617 = vmatprep.subr.bf16.mxu0 0
        %618 = vmatpush1.bf16.msra.mxu0 0
        %619 = vmatprep.subr.bf16.mxu0 0
        %620 = vmatpush1.bf16.msra.mxu0 0
        %621 = vmatprep.subr.bf16.mxu0 0
        %622 = vmatpush1.bf16.msra.mxu0 0
        %623 = vmatprep.mubr.bf16.mxu0 0
        %624 = vmatmul.mubr.bf16.gmra.mrb[0].mxu0 %v522
        %v625 = vpop.f32.mrb[0].mxu0
        %v626 = vadd.f32 %v542, %v625
        %v627 = vpop.f32.mrb[0].mxu0
        %v628 = vpop.f32.mrb[0].mxu0
        %v629 = vadd.f32 %v542, %v628
        %v630 = vpop.f32.mrb[0].mxu0
        %631 = vdwg.mxu0
        %v632 = vmax.f32 %v626, 0.0
        %v633 = vmax.f32 %v629, 0.0
        %v634 = vpack.c.bf16 %v633, %v632
        %v635 = vld [vmem:[%s5] sm:$0xf]
        %v636 = vld [vmem:[%s5 + $0x4] sm:$0xf]
        %v637 = vld [vmem:[%s5 + $0x8] sm:$0xf]
        %v638 = vld [vmem:[%s5 + $0xc] sm:$0xf]
        %v639 = vld [vmem:[%s5 + $0x10] sm:$0xf]
        %v640 = vld [vmem:[%s5 + $0x14] sm:$0xf]
        %v641 = vld [vmem:[%s5 + $0x18] sm:$0xf]
        %v642 = vld [vmem:[%s5 + $0x1c] sm:$0xf]
        %v643 = vld [vmem:[%s5 + $0x20] sm:$0xf]
        %v644 = vld [vmem:[%s5 + $0x24] sm:$0xf]
        %v645 = vld [vmem:[%s5 + $0x28] sm:$0xf]
        %v646 = vld [vmem:[%s5 + $0x2c] sm:$0xf]
        %v647 = vld [vmem:[%s5 + $0x30] sm:$0xf]
        %v648 = vld [vmem:[%s5 + $0x34] sm:$0xf]
        %v649 = vld [vmem:[%s5 + $0x38] sm:$0xf]
        %v650 = vld [vmem:[%s5 + $0x3c] sm:$0xf]
        %v651 = vlaneseq
        %v652 = vshrl.u32 %v651, 7
        %v653 = vsub.s32 2, %v652
        %v654 = vrot.slane %v386, %v653
        %v671 = vunpack.c.l.b16 %v635
        %v672 = vunpack.c.l.b16 %v636
        %v673 = vunpack.c.l.b16 %v637
        %v674 = vunpack.c.l.b16 %v638
        %v675 = vunpack.c.l.b16 %v639
        %v676 = vunpack.c.l.b16 %v640
        %v677 = vunpack.c.l.b16 %v641
        %v678 = vunpack.c.l.b16 %v642
        %v679 = vunpack.c.l.b16 %v643
        %v680 = vunpack.c.l.b16 %v644
        %v681 = vunpack.c.l.b16 %v645
        %v682 = vunpack.c.l.b16 %v646
        %v683 = vunpack.c.l.b16 %v647
        %v684 = vunpack.c.l.b16 %v648
        %v685 = vunpack.c.l.b16 %v649
        %v686 = vunpack.c.l.b16 %v650
        %v687 = vpack.c.b16 %v672, %v671
        %v688 = vpack.c.b16 %v674, %v673
        %v689 = vpack.c.b16 %v676, %v675
        %v690 = vpack.c.b16 %v678, %v677
        %v691 = vpack.c.b16 %v680, %v679
        %v692 = vpack.c.b16 %v682, %v681
        %v693 = vpack.c.b16 %v684, %v683
        %v694 = vpack.c.b16 %v686, %v685
        %703 = vmatprep.subr.bf16.mxu0 0
        %704 = vmatpush1.bf16.msra.mxu0 %v687
        %705 = vmatprep.subr.bf16.mxu0 0
        %706 = vmatpush1.bf16.msra.mxu0 %v688
        %707 = vmatprep.subr.bf16.mxu0 0
        %708 = vmatpush1.bf16.msra.mxu0 %v689
        %709 = vmatprep.subr.bf16.mxu0 0
        %710 = vmatpush1.bf16.msra.mxu0 %v690
        %711 = vmatprep.subr.bf16.mxu0 0
        %712 = vmatpush1.bf16.msra.mxu0 %v691
        %713 = vmatprep.subr.bf16.mxu0 0
        %714 = vmatpush1.bf16.msra.mxu0 %v692
        %715 = vmatprep.subr.bf16.mxu0 0
        %716 = vmatpush1.bf16.msra.mxu0 %v693
        %717 = vmatprep.subr.bf16.mxu0 0
        %718 = vmatpush1.bf16.msra.mxu0 %v694
        %719 = vmatprep.subr.bf16.mxu0 0
        %720 = vmatpush1.bf16.msra.mxu0 0
        %721 = vmatprep.subr.bf16.mxu0 0
        %722 = vmatpush1.bf16.msra.mxu0 0
        %723 = vmatprep.subr.bf16.mxu0 0
        %724 = vmatpush1.bf16.msra.mxu0 0
        %725 = vmatprep.subr.bf16.mxu0 0
        %726 = vmatpush1.bf16.msra.mxu0 0
        %727 = vmatprep.subr.bf16.mxu0 0
        %728 = vmatpush1.bf16.msra.mxu0 0
        %729 = vmatprep.subr.bf16.mxu0 0
        %730 = vmatpush1.bf16.msra.mxu0 0
        %731 = vmatprep.subr.bf16.mxu0 0
        %732 = vmatpush1.bf16.msra.mxu0 0
        %733 = vmatprep.subr.bf16.mxu0 0
        %734 = vmatpush1.bf16.msra.mxu0 0
        %735 = vmatprep.mubr.bf16.mxu0 0
        %736 = vmatmul.mubr.bf16.gmra.mrb[0].mxu0 %v634
        %v737 = vpop.f32.mrb[0].mxu0
        %v738 = vadd.f32 %v654, %v737
        %v739 = vpop.f32.mrb[0].mxu0
        %v740 = vpop.f32.mrb[0].mxu0
        %v741 = vadd.f32 %v654, %v740
        %v742 = vpop.f32.mrb[0].mxu0
        %743 = vdwg.mxu0
        %v744 = vmax.f32 %v738, 0.0
        %v745 = vmax.f32 %v741, 0.0
        %v746 = vld [vmem:[%s7] sm:$0x1]
        %s747 = sld [smem:[#allocation2]]
        %v748 = vstv %s747
        %749 = vmatprep.subr.mxu0 0.0
        %750 = vmatpush1.xpose.msra.mxu0 %v744
        %751 = vmatprep.subr.mxu0 0.0
        %752 = vmatpush1.xpose.msra.mxu0 %v745
        %753 = vmatprep.subr.mxu0 0.0
        %754 = vmatpush1.xpose.msra.mxu0 0.0
        %755 = vmatprep.subr.mxu0 0.0
        %756 = vmatpush1.xpose.msra.mxu0 0.0
        %757 = vmatprep.subr.mxu0 0.0
        %758 = vmatpush1.xpose.msra.mxu0 0.0
        %759 = vmatprep.subr.mxu0 0.0
        %760 = vmatpush1.xpose.msra.mxu0 0.0
        %761 = vmatprep.subr.mxu0 0.0
        %762 = vmatpush1.xpose.msra.mxu0 0.0
        %763 = vmatprep.subr.mxu0 0.0
        %764 = vmatpush1.xpose.msra.mxu0 0.0
        %765 = vmatprep.subr.mxu0 0.0
        %766 = vmatpush1.xpose.msra.mxu0 0.0
        %767 = vmatprep.subr.mxu0 0.0
        %768 = vmatpush1.xpose.msra.mxu0 0.0
        %769 = vmatprep.subr.mxu0 0.0
        %770 = vmatpush1.xpose.msra.mxu0 0.0
        %771 = vmatprep.subr.mxu0 0.0
        %772 = vmatpush1.xpose.msra.mxu0 0.0
        %773 = vmatprep.subr.mxu0 0.0
        %774 = vmatpush1.xpose.msra.mxu0 0.0
        %775 = vmatprep.subr.mxu0 0.0
        %776 = vmatpush1.xpose.msra.mxu0 0.0
        %777 = vmatprep.subr.mxu0 0.0
        %778 = vmatpush1.xpose.msra.mxu0 0.0
        %779 = vmatprep.subr.mxu0 0.0
        %780 = vmatpush1.xpose.msra.mxu0 0.0
        %781 = vmatprep.subr.mxu0 0.0
        %782 = vmatpush1.xpose.msra.mxu0 0.0
        %783 = vmatprep.subr.mxu0 0.0
        %784 = vmatpush1.xpose.msra.mxu0 0.0
        %785 = vmatprep.subr.mxu0 0.0
        %786 = vmatpush1.xpose.msra.mxu0 0.0
        %787 = vmatprep.subr.mxu0 0.0
        %788 = vmatpush1.xpose.msra.mxu0 0.0
        %789 = vmatprep.subr.mxu0 0.0
        %790 = vmatpush1.xpose.msra.mxu0 0.0
        %791 = vmatprep.subr.mxu0 0.0
        %792 = vmatpush1.xpose.msra.mxu0 0.0
        %793 = vmatprep.subr.mxu0 0.0
        %794 = vmatpush1.xpose.msra.mxu0 0.0
        %795 = vmatprep.subr.mxu0 0.0
        %796 = vmatpush1.xpose.msra.mxu0 0.0
        %797 = vmatprep.subr.mxu0 0.0
        %798 = vmatpush1.xpose.msra.mxu0 0.0
        %799 = vmatprep.subr.mxu0 0.0
        %800 = vmatpush1.xpose.msra.mxu0 0.0
        %801 = vmatprep.subr.mxu0 0.0
        %802 = vmatpush1.xpose.msra.mxu0 0.0
        %803 = vmatprep.subr.mxu0 0.0
        %804 = vmatpush1.xpose.msra.mxu0 0.0
        %805 = vmatprep.subr.mxu0 0.0
        %806 = vmatpush1.xpose.msra.mxu0 0.0
        %807 = vmatprep.subr.mxu0 0.0
        %808 = vmatpush1.xpose.msra.mxu0 0.0
        %809 = vmatprep.subr.mxu0 0.0
        %810 = vmatpush1.xpose.msra.mxu0 0.0
        %811 = vmatprep.subr.mxu0 0.0
        %812 = vmatpush1.xpose.msra.mxu0 0.0
        %813 = vmatprep.mubr.f32.mxu0 0.0
        %814 = vmatmul.mubr.f32.gmra.mrb[0].mxu0 %v746
        %v815 = vpop.f32.mrb[0].mxu0
        %v816 = vadd.f32 %v748, %v815
        %v817 = vpop.f32.mrb[0].mxu0
        %818 = vdwg.mxu0
        %v819 = vsub.f32 0.0, %v816
        %v820 = vmul.f32 %v819, 1.442695
        %v821 = vpow.pop %v820
        %v822 = vadd.f32 %v821, 1.0
        %v823 = vrcp.pop %v822
        %v824 = vmul.f32 1.0, %v823
        %vm825 = vcmask 122880
        %826 = vst.msk [vmem:[%s372] sm:$0x1] %vm825, %v824
        %s827 = sand.u32 %s233, 1
        %s828 = scalar_lea.sflag [#allocation5], %s827
        %s829 = sand.u32 %s233, 1
        %s830 = scalar_lea.vmem [#allocation8], %s829
        // Predicated region
        $region65: #{tpu_custom_call.1} parent=55 // pred_check
          %p831 = pneg %p243
        $region66: #{tpu_custom_call.1} parent=55 // pred_check_branch
          %833 = sbr.rel (%p831) target = $region68
        $region67: #{tpu_custom_call.1} parent=55 // pred_region
          %s835 = ssub.s32 16, 16
          %836 = vsyncadd %s828, %s835
          %s837 = smul.addr %s26, 16
          %s838 = scalar_lea.hbm %s9, %s837
          %s840 = sshll.u32 %s830, 4
          %s841 = int_to_ptr.vmem [resolvable:$true] %s840
          %843 = dma.vmem_to_hbm [thread:$0]  %s841, 16, %s838, %s828
        $region68: #{tpu_custom_call.1} parent=55 // pred_fallthru
          _
      $region56: #{tpu_custom_call.1} parent=5 // pred_fallthru
        _
      %p844 = scmp.le.s32.totalorder 2, %s21
      // Predicated region
      $region69: #{tpu_custom_call.1} parent=5 // pred_check
        %p845 = pneg %p844
      $region70: #{tpu_custom_call.1} parent=5 // pred_check_branch
        %847 = sbr.rel (%p845) target = $region72
      $region71: #{tpu_custom_call.1} parent=5 // pred_region
        %s848 = ssub.s32 %s21, 2
        // Predicated region
        $region73: #{tpu_custom_call.1} parent=71 // pred_check
          %p849 = pneg %p249
        $region74: #{tpu_custom_call.1} parent=71 // pred_check_branch
          %851 = sbr.rel (%p849) target = $region76
        $region75: #{tpu_custom_call.1} parent=71 // pred_region
          %s852 = sand.u32 %s234, 1
          %s853 = scalar_lea.sflag [#allocation5], %s852
          %s854 = sand.u32 %s234, 1
          %s855 = scalar_lea.vmem [#allocation8], %s854
          %856 = dma.done %s853, 16
        $region76: #{tpu_custom_call.1} parent=71 // pred_fallthru
          _
      $region72: #{tpu_custom_call.1} parent=5 // pred_fallthru
        _
    $region6: #{tpu_custom_call.1} parent=1 // loop_footer
      %s25 = sadd.s32 1, %s21
    $region7: #{tpu_custom_call.1} parent=1 // loop_footer_branch
      %20 = sbr.rel target = $region3
    $region8: #{tpu_custom_call.1} parent=1 // loop_exit
      _
    %857 = vsyncpa [#allocation4], 1
    %s858 = scalar_lea.sflag [#allocation4], 1
    %859 = vsyncpa %s858, 1
    %860 = vsyncpa [#allocation7], 1
    %861 = vsyncpa [#allocation5], 1
    %s862 = scalar_lea.sflag [#allocation5], 1
    %863 = vsyncpa %s862, 1

// kernel: tpu_custom_call.1
$region0: #{tpu_custom_call.1}
  #allocation0 [shape = 'u32[]', space=smem, size = 0x4, offset = 0x4, fixed_abs, tag = 'smem constant byte address 0x4 - core index']
  #allocation1 [shape = 'u32[144,128]{1,0:T(1,128)}', space=vmem, size = 0x12000, scoped, tag = 'internal scratch']
  #allocation2 [shape = 'f32[1]{0:T(128)S(6)}', space=smem, size = 0x200, scoped, tag = 'scoped memory for tpu_custom_call.1']
  %s0 = inlined_call_operand.vmem [shape: f32[48,32], index: 0, kind: input, shape index: {}]
  %s1 = inlined_call_operand.vmem [shape: f32[48,32], index: 1, kind: input, shape index: {}]
  %s2 = inlined_call_operand.hbm [shape: bf16[32,128], index: 2, kind: input, shape index: {}]
  %s3 = inlined_call_operand.hbm [shape: bf16[32,128], index: 3, kind: input, shape index: {}]
  %s4 = inlined_call_operand.vmem [shape: bf16[128,128], index: 4, kind: input, shape index: {}]
  %s5 = inlined_call_operand.vmem [shape: bf16[128,128], index: 5, kind: input, shape index: {}]
  %s6 = inlined_call_operand.vmem [shape: f32[3,128], index: 6, kind: input, shape index: {}]
  %s7 = inlined_call_operand.vmem [shape: f32[1,128], index: 7, kind: input, shape index: {}]
  %s8 = inlined_call_operand.<no memory space> [shape: f32[1], index: 8, kind: input, shape index: {}]
  %s9 = inlined_call_operand.hbm [shape: f32[3,1,16], index: 9, kind: output, shape index: {}]
  %s10 = sld [smem:[#allocation0]]
  $region77: #{tpu_custom_call.1} parent=0
    _
  %s12 = ssub.s32 1, %s10
  %s13 = scalar_select 0, %s12, %s10
  %14 = sst [smem:[#allocation2]] %s8
  $region1: #{tpu_custom_call.1} parent=0
    #allocation3 [shape = 'u8[8192]{0}', space=vmem, size = 0x2000, scoped, tag = 'input window, operand 2, single buffered']
    #allocation4 [shape = 's32[2]{0}', space=sflag, size = 0x8, scoped, tag = 'scoped memory for tpu_custom_call.1']
    #allocation5 [shape = 's32[2]{0}', space=sflag, size = 0x8, scoped, tag = 'scoped memory for tpu_custom_call.1']
    #allocation6 [shape = 'u8[8192]{0}', space=vmem, size = 0x2000, scoped, tag = 'input window, operand 3, single buffered']
    #allocation7 [shape = 's32[1]{0}', space=sflag, size = 0x4, scoped, tag = 'scoped memory for tpu_custom_call.1']
    #allocation8 [shape = 'u8[1024]{0}', space=vmem, size = 0x400, scoped, tag = 'output window, operand 0']
    %15 = vsyncpa [#allocation4], 0
    %16 = vsyncpa [#allocation7], 0
    %17 = vsyncpa [#allocation5], 0
    %s18 = scalar_lea.sflag [#allocation5], 1
    %19 = vsyncpa %s18, 0
    loop: start=0, step=1, limit=5
    $region2: #{tpu_custom_call.1} parent=1 // loop_pre_header
      _
    $region3: #{tpu_custom_call.1} parent=1 // loop_header
      %s21 = sphi 0, %s25
      %p22 = scmp.ge.s32.totalorder %s21, 5
      %s31 = sphi 0, %s33
      %s34 = sphi 0, %s31
      %s35 = sphi 0, %s34
      %s51 = sphi 0, %s35
      %s57 = sphi 0, %s59
      %s60 = sphi 0, %s57
      %s61 = sphi 0, %s60
      %s77 = sphi 0, %s61
      %s81 = sphi 0, %s81
      %s83 = sphi 0, %s81
      %s84 = sphi 0, %s83
      %s98 = sphi 0, %s84
      %s102 = sphi 0, %s102
      %s104 = sphi 0, %s102
      %s105 = sphi 0, %s104
      %s119 = sphi 0, %s105
      %s123 = sphi 0, %s123
      %s125 = sphi 0, %s123
      %s126 = sphi 0, %s125
      %s140 = sphi 0, %s126
      %s144 = sphi 0, %s144
      %s146 = sphi 0, %s144
      %s147 = sphi 0, %s146
      %s161 = sphi 0, %s147
      %s165 = sphi 0, %s165
      %s167 = sphi 0, %s165
      %s168 = sphi 0, %s167
      %s182 = sphi 0, %s168
      %s186 = sphi 0, %s186
      %s188 = sphi 0, %s186
      %s189 = sphi 0, %s188
      %s203 = sphi 0, %s189
      %s207 = sphi 0, %s207
      %s209 = sphi 0, %s207
      %s210 = sphi 0, %s209
      %s224 = sphi 0, %s210
      %s230 = sphi 0, %s232
      %s233 = sphi 0, %s230
      %s234 = sphi 0, %s233
      %s250 = sphi 0, %s234
    $region4: #{tpu_custom_call.1} parent=1 // loop_header_branch
      %24 = sbr.rel (%p22) target = $region8
    $region5: #{tpu_custom_call.1} parent=1 // loop_body
      %s26 = ssub.s32 %s21, 1
      %s27 = ssub.s32 %s21, 2
      %s28 = sadd.s32 %s21, 1
      %s29 = ssub.s32 %s21, %s28
      %p30 = scmp.eq.s32.totalorder %s29, 0
      %s32 = sadd.s32 %s31, 1
      %s33 = scalar_select %p30, %s31, %s32
      %p36 = pneg %p30
      %p37 = scmp.eq.s32.totalorder %s21, 2
      %p38 = por %p36, %p37
      %p39 = scmp.ne.s32.totalorder %s31, %s34
      %p40 = scmp.eq.s32.totalorder %s21, 0
      %p41 = por %p39, %p40
      %p42 = scmp.ne.s32.totalorder %s31, %s34
      %p43 = scmp.eq.s32.totalorder %s26, 2
      %p44 = por %p42, %p43
      %p45 = scmp.ne.s32.totalorder %s34, %s35
      %p46 = scmp.eq.s32.totalorder %s26, 0
      %p47 = por %p45, %p46
      %p48 = scmp.ne.s32.totalorder %s34, %s35
      %p49 = scmp.eq.s32.totalorder %s27, 2
      %p50 = por %p48, %p49
      %p52 = scmp.ne.s32.totalorder %s35, %s51
      %p53 = scmp.eq.s32.totalorder %s27, 0
      %p54 = por %p52, %p53
      %s55 = ssub.s32 %s21, %s28
      %p56 = scmp.eq.s32.totalorder %s55, 0
      %s58 = sadd.s32 %s57, 1
      %s59 = scalar_select %p56, %s57, %s58
      %p62 = pneg %p56
      %p63 = scmp.eq.s32.totalorder %s21, 2
      %p64 = por %p62, %p63
      %p65 = scmp.ne.s32.totalorder %s57, %s60
      %p66 = scmp.eq.s32.totalorder %s21, 0
      %p67 = por %p65, %p66
      %p68 = scmp.ne.s32.totalorder %s57, %s60
      %p69 = scmp.eq.s32.totalorder %s26, 2
      %p70 = por %p68, %p69
      %p71 = scmp.ne.s32.totalorder %s60, %s61
      %p72 = scmp.eq.s32.totalorder %s26, 0
      %p73 = por %p71, %p72
      %p74 = scmp.ne.s32.totalorder %s60, %s61
      %p75 = scmp.eq.s32.totalorder %s27, 2
      %p76 = por %p74, %p75
      %p78 = scmp.ne.s32.totalorder %s61, %s77
      %p79 = scmp.eq.s32.totalorder %s27, 0
      %p80 = por %p78, %p79
      %s82 = sadd.s32 %s81, 1
      %p85 = scmp.eq.s32.totalorder %s21, 2
      %p86 = scmp.ne.s32.totalorder %s81, %s83
      %p87 = scmp.eq.s32.totalorder %s21, 0
      %p88 = por %p86, %p87
      %p89 = scmp.ne.s32.totalorder %s81, %s83
      %p90 = scmp.eq.s32.totalorder %s26, 2
      %p91 = por %p89, %p90
      %p92 = scmp.ne.s32.totalorder %s83, %s84
      %p93 = scmp.eq.s32.totalorder %s26, 0
      %p94 = por %p92, %p93
      %p95 = scmp.ne.s32.totalorder %s83, %s84
      %p96 = scmp.eq.s32.totalorder %s27, 2
      %p97 = por %p95, %p96
      %p99 = scmp.ne.s32.totalorder %s84, %s98
      %p100 = scmp.eq.s32.totalorder %s27, 0
      %p101 = por %p99, %p100
      %s103 = sadd.s32 %s102, 1
      %p106 = scmp.eq.s32.totalorder %s21, 2
      %p107 = scmp.ne.s32.totalorder %s102, %s104
      %p108 = scmp.eq.s32.totalorder %s21, 0
      %p109 = por %p107, %p108
      %p110 = scmp.ne.s32.totalorder %s102, %s104
      %p111 = scmp.eq.s32.totalorder %s26, 2
      %p112 = por %p110, %p111
      %p113 = scmp.ne.s32.totalorder %s104, %s105
      %p114 = scmp.eq.s32.totalorder %s26, 0
      %p115 = por %p113, %p114
      %p116 = scmp.ne.s32.totalorder %s104, %s105
      %p117 = scmp.eq.s32.totalorder %s27, 2
      %p118 = por %p116, %p117
      %p120 = scmp.ne.s32.totalorder %s105, %s119
      %p121 = scmp.eq.s32.totalorder %s27, 0
      %p122 = por %p120, %p121
      %s124 = sadd.s32 %s123, 1
      %p127 = scmp.eq.s32.totalorder %s21, 2
      %p128 = scmp.ne.s32.totalorder %s123, %s125
      %p129 = scmp.eq.s32.totalorder %s21, 0
      %p130 = por %p128, %p129
      %p131 = scmp.ne.s32.totalorder %s123, %s125
      %p132 = scmp.eq.s32.totalorder %s26, 2
      %p133 = por %p131, %p132
      %p134 = scmp.ne.s32.totalorder %s125, %s126
      %p135 = scmp.eq.s32.totalorder %s26, 0
      %p136 = por %p134, %p135
      %p137 = scmp.ne.s32.totalorder %s125, %s126
      %p138 = scmp.eq.s32.totalorder %s27, 2
      %p139 = por %p137, %p138
      %p141 = scmp.ne.s32.totalorder %s126, %s140
      %p142 = scmp.eq.s32.totalorder %s27, 0
      %p143 = por %p141, %p142
      %s145 = sadd.s32 %s144, 1
      %p148 = scmp.eq.s32.totalorder %s21, 2
      %p149 = scmp.ne.s32.totalorder %s144, %s146
      %p150 = scmp.eq.s32.totalorder %s21, 0
      %p151 = por %p149, %p150
      %p152 = scmp.ne.s32.totalorder %s144, %s146
      %p153 = scmp.eq.s32.totalorder %s26, 2
      %p154 = por %p152, %p153
      %p155 = scmp.ne.s32.totalorder %s146, %s147
      %p156 = scmp.eq.s32.totalorder %s26, 0
      %p157 = por %p155, %p156
      %p158 = scmp.ne.s32.totalorder %s146, %s147
      %p159 = scmp.eq.s32.totalorder %s27, 2
      %p160 = por %p158, %p159
      %p162 = scmp.ne.s32.totalorder %s147, %s161
      %p163 = scmp.eq.s32.totalorder %s27, 0
      %p164 = por %p162, %p163
      %s166 = sadd.s32 %s165, 1
      %p169 = scmp.eq.s32.totalorder %s21, 2
      %p170 = scmp.ne.s32.totalorder %s165, %s167
      %p171 = scmp.eq.s32.totalorder %s21, 0
      %p172 = por %p170, %p171
      %p173 = scmp.ne.s32.totalorder %s165, %s167
      %p174 = scmp.eq.s32.totalorder %s26, 2
      %p175 = por %p173, %p174
      %p176 = scmp.ne.s32.totalorder %s167, %s168
      %p177 = scmp.eq.s32.totalorder %s26, 0
      %p178 = por %p176, %p177
      %p179 = scmp.ne.s32.totalorder %s167, %s168
      %p180 = scmp.eq.s32.totalorder %s27, 2
      %p181 = por %p179, %p180
      %p183 = scmp.ne.s32.totalorder %s168, %s182
      %p184 = scmp.eq.s32.totalorder %s27, 0
      %p185 = por %p183, %p184
      %s187 = sadd.s32 %s186, 1
      %p190 = scmp.eq.s32.totalorder %s21, 2
      %p191 = scmp.ne.s32.totalorder %s186, %s188
      %p192 = scmp.eq.s32.totalorder %s21, 0
      %p193 = por %p191, %p192
      %p194 = scmp.ne.s32.totalorder %s186, %s188
      %p195 = scmp.eq.s32.totalorder %s26, 2
      %p196 = por %p194, %p195
      %p197 = scmp.ne.s32.totalorder %s188, %s189
      %p198 = scmp.eq.s32.totalorder %s26, 0
      %p199 = por %p197, %p198
      %p200 = scmp.ne.s32.totalorder %s188, %s189
      %p201 = scmp.eq.s32.totalorder %s27, 2
      %p202 = por %p200, %p201
      %p204 = scmp.ne.s32.totalorder %s189, %s203
      %p205 = scmp.eq.s32.totalorder %s27, 0
      %p206 = por %p204, %p205
      %s208 = sadd.s32 %s207, 1
      %p211 = scmp.eq.s32.totalorder %s21, 2
      %p212 = scmp.ne.s32.totalorder %s207, %s209
      %p213 = scmp.eq.s32.totalorder %s21, 0
      %p214 = por %p212, %p213
      %p215 = scmp.ne.s32.totalorder %s207, %s209
      %p216 = scmp.eq.s32.totalorder %s26, 2
      %p217 = por %p215, %p216
      %p218 = scmp.ne.s32.totalorder %s209, %s210
      %p219 = scmp.eq.s32.totalorder %s26, 0
      %p220 = por %p218, %p219
      %p221 = scmp.ne.s32.totalorder %s209, %s210
      %p222 = scmp.eq.s32.totalorder %s27, 2
      %p223 = por %p221, %p222
      %p225 = scmp.ne.s32.totalorder %s210, %s224
      %p226 = scmp.eq.s32.totalorder %s27, 0
      %p227 = por %p225, %p226
      %s228 = ssub.s32 %s21, %s28
      %p229 = scmp.eq.s32.totalorder %s228, 0
      %s231 = sadd.s32 %s230, 1
      %s232 = scalar_select %p229, %s230, %s231
      %p235 = pneg %p229
      %p236 = scmp.eq.s32.totalorder %s21, 2
      %p237 = por %p235, %p236
      %p238 = scmp.ne.s32.totalorder %s230, %s233
      %p239 = scmp.eq.s32.totalorder %s21, 0
      %p240 = por %p238, %p239
      %p241 = scmp.ne.s32.totalorder %s230, %s233
      %p242 = scmp.eq.s32.totalorder %s26, 2
      %p243 = por %p241, %p242
      %p244 = scmp.ne.s32.totalorder %s233, %s234
      %p245 = scmp.eq.s32.totalorder %s26, 0
      %p246 = por %p244, %p245
      %p247 = scmp.ne.s32.totalorder %s233, %s234
      %p248 = scmp.eq.s32.totalorder %s27, 2
      %p249 = por %p247, %p248
      %p251 = scmp.ne.s32.totalorder %s234, %s250
      %p252 = scmp.eq.s32.totalorder %s27, 0
      %p253 = por %p251, %p252
      %p254 = scmp.le.s32.totalorder 1, %s21
      %p255 = scmp.lt.s32.totalorder %s21, 4
      %p256 = pnand %p254, %p255
      %p257 = pneg %p256
      // Predicated region
      $region9: #{tpu_custom_call.1} parent=5 // pred_check
        _
      $region10: #{tpu_custom_call.1} parent=5 // pred_check_branch
        %259 = sbr.rel (%p256) target = $region12
      $region11: #{tpu_custom_call.1} parent=5 // pred_region
        %s260 = ssub.s32 %s21, 1
        // Predicated region
        $region13: #{tpu_custom_call.1} parent=11 // pred_check
          %p261 = pneg %p94
        $region14: #{tpu_custom_call.1} parent=11 // pred_check_branch
          %263 = sbr.rel (%p261) target = $region16
        $region15: #{tpu_custom_call.1} parent=11 // pred_region
          %s265 = ssub.s32 256, 256
          %266 = vsyncadd [#allocation4], %s265
          %s267 = sshll.u32 [#allocation3], 4
          %s268 = int_to_ptr.vmem [resolvable:$true] %s267
          %273 = dma.hbm_to_vmem [thread:$0]  %s2, 256, %s268, [#allocation4], 64, 64, 4
        $region16: #{tpu_custom_call.1} parent=11 // pred_fallthru
          _
        // Predicated region
        $region17: #{tpu_custom_call.1} parent=11 // pred_check
          %p274 = pneg %p115
        $region18: #{tpu_custom_call.1} parent=11 // pred_check_branch
          %276 = sbr.rel (%p274) target = $region20
        $region19: #{tpu_custom_call.1} parent=11 // pred_region
          %s278 = ssub.s32 256, 256
          %279 = vsyncadd [#allocation7], %s278
          %s280 = sshll.u32 [#allocation6], 4
          %s281 = int_to_ptr.vmem [resolvable:$true] %s280
          %286 = dma.hbm_to_vmem [thread:$0]  %s3, 256, %s281, [#allocation7], 64, 64, 4
        $region20: #{tpu_custom_call.1} parent=11 // pred_fallthru
          _
        // Predicated region
        $region21: #{tpu_custom_call.1} parent=11 // pred_check
          %p287 = pneg %p136
        $region22: #{tpu_custom_call.1} parent=11 // pred_check_branch
          %289 = sbr.rel (%p287) target = $region24
        $region23: #{tpu_custom_call.1} parent=11 // pred_region
          _
        $region24: #{tpu_custom_call.1} parent=11 // pred_fallthru
          _
        // Predicated region
        $region25: #{tpu_custom_call.1} parent=11 // pred_check
          %p290 = pneg %p157
        $region26: #{tpu_custom_call.1} parent=11 // pred_check_branch
          %292 = sbr.rel (%p290) target = $region28
        $region27: #{tpu_custom_call.1} parent=11 // pred_region
          _
        $region28: #{tpu_custom_call.1} parent=11 // pred_fallthru
          _
        // Predicated region
        $region29: #{tpu_custom_call.1} parent=11 // pred_check
          %p293 = pneg %p178
        $region30: #{tpu_custom_call.1} parent=11 // pred_check_branch
          %295 = sbr.rel (%p293) target = $region32
        $region31: #{tpu_custom_call.1} parent=11 // pred_region
          _
        $region32: #{tpu_custom_call.1} parent=11 // pred_fallthru
          _
        // Predicated region
        $region33: #{tpu_custom_call.1} parent=11 // pred_check
          %p296 = pneg %p199
        $region34: #{tpu_custom_call.1} parent=11 // pred_check_branch
          %298 = sbr.rel (%p296) target = $region36
        $region35: #{tpu_custom_call.1} parent=11 // pred_region
          _
        $region36: #{tpu_custom_call.1} parent=11 // pred_fallthru
          _
        // Predicated region
        $region37: #{tpu_custom_call.1} parent=11 // pred_check
          %p299 = pneg %p220
        $region38: #{tpu_custom_call.1} parent=11 // pred_check_branch
          %301 = sbr.rel (%p299) target = $region40
        $region39: #{tpu_custom_call.1} parent=11 // pred_region
          _
        $region40: #{tpu_custom_call.1} parent=11 // pred_fallthru
          _
      $region12: #{tpu_custom_call.1} parent=5 // pred_fallthru
        _
      %p302 = scmp.lt.s32.totalorder %s21, 3
      // Predicated region
      $region41: #{tpu_custom_call.1} parent=5 // pred_check
        %p303 = pneg %p302
      $region42: #{tpu_custom_call.1} parent=5 // pred_check_branch
        %305 = sbr.rel (%p303) target = $region44
      $region43: #{tpu_custom_call.1} parent=5 // pred_region
        // Predicated region
        $region45: #{tpu_custom_call.1} parent=43 // pred_check
          %p306 = pneg %p41
        $region46: #{tpu_custom_call.1} parent=43 // pred_check_branch
          %308 = sbr.rel (%p306) target = $region48
        $region47: #{tpu_custom_call.1} parent=43 // pred_region
          %s309 = smul.u32 2, %s21
          %p310 = scmp.lt.s32.totalorder %s309, 5
          %s311 = scalar_select %p310, %s309, 5
          %s312 = smul.addr %s311, 8
          %s313 = scalar_lea.vmem %s0, %s312
          %s314 = smul.u32 2, %s21
        $region48: #{tpu_custom_call.1} parent=43 // pred_fallthru
          _
        // Predicated region
        $region49: #{tpu_custom_call.1} parent=43 // pred_check
          %p315 = pneg %p67
        $region50: #{tpu_custom_call.1} parent=43 // pred_check_branch
          %317 = sbr.rel (%p315) target = $region52
        $region51: #{tpu_custom_call.1} parent=43 // pred_region
          %s318 = smul.u32 2, %s21
          %p319 = scmp.lt.s32.totalorder %s318, 5
          %s320 = scalar_select %p319, %s318, 5
          %s321 = smul.addr %s320, 8
          %s322 = scalar_lea.vmem %s1, %s321
          %s323 = smul.u32 2, %s21
        $region52: #{tpu_custom_call.1} parent=43 // pred_fallthru
          _
      $region44: #{tpu_custom_call.1} parent=5 // pred_fallthru
        _
      %p324 = scmp.le.s32.totalorder 1, %s21
      %p325 = scmp.lt.s32.totalorder %s21, 4
      %p326 = pnand %p324, %p325
      %p327 = pneg %p326
      // Predicated region
      $region53: #{tpu_custom_call.1} parent=5 // pred_check
        _
      $region54: #{tpu_custom_call.1} parent=5 // pred_check_branch
        %329 = sbr.rel (%p326) target = $region56
      $region55: #{tpu_custom_call.1} parent=5 // pred_region
        %s330 = ssub.s32 %s21, 1
        // Predicated region
        $region57: #{tpu_custom_call.1} parent=55 // pred_check
          %p331 = pneg %p94
        $region58: #{tpu_custom_call.1} parent=55 // pred_check_branch
          %333 = sbr.rel (%p331) target = $region60
        $region59: #{tpu_custom_call.1} parent=55 // pred_region
          %334 = dma.done [#allocation4], 256
        $region60: #{tpu_custom_call.1} parent=55 // pred_fallthru
          _
        // Predicated region
        $region61: #{tpu_custom_call.1} parent=55 // pred_check
          %p335 = pneg %p115
        $region62: #{tpu_custom_call.1} parent=55 // pred_check_branch
          %337 = sbr.rel (%p335) target = $region64
        $region63: #{tpu_custom_call.1} parent=55 // pred_region
          %338 = dma.done [#allocation7], 256
        $region64: #{tpu_custom_call.1} parent=55 // pred_fallthru
          _
        %s339 = smul.u32 2, %s26
        %p340 = scmp.lt.s32.totalorder %s339, 5
        %s341 = scalar_select %p340, %s339, 5
        %s342 = smul.addr %s341, 8
        %s343 = scalar_lea.vmem %s0, %s342
        %p344 = pneg %p47
        %p345 = pneg %p44
        %s346 = smul.u32 2, %s26
        %p347 = scmp.lt.s32.totalorder %s346, 5
        %s348 = scalar_select %p347, %s346, 5
        %s349 = smul.addr %s348, 8
        %s350 = scalar_lea.vmem %s1, %s349
        %p351 = pneg %p73
        %p352 = pneg %p70
        %p353 = pneg %p94
        %p354 = pneg %p91
        %p355 = pneg %p115
        %p356 = pneg %p112
        %p357 = pneg %p136
        %p358 = pneg %p133
        %p359 = pneg %p157
        %p360 = pneg %p154
        %p361 = pneg %p178
        %p362 = pneg %p175
        %p363 = pneg %p199
        %p364 = pneg %p196
        %p365 = pneg %p220
        %p366 = pneg %p217
        %p367 = pneg %p246
        %p368 = pneg %p243
        %s369 = sand.u32 %s233, 1
        %s370 = scalar_lea.sflag [#allocation5], %s369
        %s371 = sand.u32 %s233, 1
        %s372 = scalar_lea.vmem [#allocation8], %s371
        %s373 = smul.u32 2, %s26
        %p374 = scmp.lt.s32.totalorder %s373, 5
        %s375 = scalar_select %p374, %s373, 5
        %s376 = smul.addr %s375, 8
        %s377 = scalar_lea.vmem %s0, %s376
        %s378 = smul.u32 2, %s26
        %s379 = smul.u32 2, %s26
        %p380 = scmp.lt.s32.totalorder %s379, 5
        %s381 = scalar_select %p380, %s379, 5
        %s382 = smul.addr %s381, 8
        %s383 = scalar_lea.vmem %s1, %s382
        %s384 = smul.u32 2, %s26
        %v386 = vld [vmem:[%s6] sm:$0x7]
        %v387 = vld [vmem:[%s377] sm:$0xff]
        %v388 = vld [vmem:[%s377 + $0x8] sm:$0xff]
        %v389 = vpack.c.bf16 %v388, %v387
        %v390 = vld [vmem:[%s383] sm:$0xff]
        %v391 = vld [vmem:[%s383 + $0x8] sm:$0xff]
        %v392 = vpack.c.bf16 %v391, %v390
        %v393 = vld [vmem:[#allocation3] sm:$0xf]
        %v394 = vld [vmem:[#allocation3 + $0x4] sm:$0xf]
        %v395 = vld [vmem:[#allocation3 + $0x8] sm:$0xf]
        %v396 = vld [vmem:[#allocation3 + $0xc] sm:$0xf]
        %v397 = vld [vmem:[#allocation6] sm:$0xf]
        %v398 = vld [vmem:[#allocation6 + $0x4] sm:$0xf]
        %v399 = vld [vmem:[#allocation6 + $0x8] sm:$0xf]
        %v400 = vld [vmem:[#allocation6 + $0xc] sm:$0xf]
        %v405 = vunpack.c.l.b16 %v397
        %v406 = vunpack.c.l.b16 %v398
        %v407 = vunpack.c.l.b16 %v399
        %v408 = vunpack.c.l.b16 %v400
        %v409 = vpack.c.b16 %v406, %v405
        %v410 = vpack.c.b16 %v408, %v407
        %vm413 = vcmask 261120
        %v415 = vsel %vm413, %v392, 0
        %417 = vmatprep.subr.bf16.mxu0 0
        %418 = vmatpush1.bf16.msra.mxu0 %v409
        %419 = vmatprep.subr.bf16.mxu0 0
        %420 = vmatpush1.bf16.msra.mxu0 %v410
        %421 = vmatprep.subr.bf16.mxu0 0
        %422 = vmatpush1.bf16.msra.mxu0 0
        %423 = vmatprep.subr.bf16.mxu0 0
        %424 = vmatpush1.bf16.msra.mxu0 0
        %425 = vmatprep.subr.bf16.mxu0 0
        %426 = vmatpush1.bf16.msra.mxu0 0
        %427 = vmatprep.subr.bf16.mxu0 0
        %428 = vmatpush1.bf16.msra.mxu0 0
        %429 = vmatprep.subr.bf16.mxu0 0
        %430 = vmatpush1.bf16.msra.mxu0 0
        %431 = vmatprep.subr.bf16.mxu0 0
        %432 = vmatpush1.bf16.msra.mxu0 0
        %433 = vmatprep.subr.bf16.mxu0 0
        %434 = vmatpush1.bf16.msra.mxu0 0
        %435 = vmatprep.subr.bf16.mxu0 0
        %436 = vmatpush1.bf16.msra.mxu0 0
        %437 = vmatprep.subr.bf16.mxu0 0
        %438 = vmatpush1.bf16.msra.mxu0 0
        %439 = vmatprep.subr.bf16.mxu0 0
        %440 = vmatpush1.bf16.msra.mxu0 0
        %441 = vmatprep.subr.bf16.mxu0 0
        %442 = vmatpush1.bf16.msra.mxu0 0
        %443 = vmatprep.subr.bf16.mxu0 0
        %444 = vmatpush1.bf16.msra.mxu0 0
        %445 = vmatprep.subr.bf16.mxu0 0
        %446 = vmatpush1.bf16.msra.mxu0 0
        %447 = vmatprep.subr.bf16.mxu0 0
        %448 = vmatpush1.bf16.msra.mxu0 0
        %449 = vmatprep.mubr.bf16.mxu0 0
        %450 = vmatmul.mubr.bf16.gmra.mrb[0].mxu0 %v415
        %v451 = vpop.f32.mrb[0].mxu0
        %v452 = vadd.f32 0.0, %v451
        %v453 = vpop.f32.mrb[0].mxu0
        %v454 = vpop.f32.mrb[0].mxu0
        %v455 = vadd.f32 0.0, %v454
        %v456 = vpop.f32.mrb[0].mxu0
        %457 = vdwg.mxu0
        %v462 = vunpack.c.l.b16 %v393
        %v463 = vunpack.c.l.b16 %v394
        %v464 = vunpack.c.l.b16 %v395
        %v465 = vunpack.c.l.b16 %v396
        %v466 = vpack.c.b16 %v463, %v462
        %v467 = vpack.c.b16 %v465, %v464
        %v471 = vsel %vm413, %v389, 0
        %473 = vmatprep.subr.bf16.mxu0 0
        %474 = vmatpush1.bf16.msra.mxu0 %v466
        %475 = vmatprep.subr.bf16.mxu0 0
        %476 = vmatpush1.bf16.msra.mxu0 %v467
        %477 = vmatprep.subr.bf16.mxu0 0
        %478 = vmatpush1.bf16.msra.mxu0 0
        %479 = vmatprep.subr.bf16.mxu0 0
        %480 = vmatpush1.bf16.msra.mxu0 0
        %481 = vmatprep.subr.bf16.mxu0 0
        %482 = vmatpush1.bf16.msra.mxu0 0
        %483 = vmatprep.subr.bf16.mxu0 0
        %484 = vmatpush1.bf16.msra.mxu0 0
        %485 = vmatprep.subr.bf16.mxu0 0
        %486 = vmatpush1.bf16.msra.mxu0 0
        %487 = vmatprep.subr.bf16.mxu0 0
        %488 = vmatpush1.bf16.msra.mxu0 0
        %489 = vmatprep.subr.bf16.mxu0 0
        %490 = vmatpush1.bf16.msra.mxu0 0
        %491 = vmatprep.subr.bf16.mxu0 0
        %492 = vmatpush1.bf16.msra.mxu0 0
        %493 = vmatprep.subr.bf16.mxu0 0
        %494 = vmatpush1.bf16.msra.mxu0 0
        %495 = vmatprep.subr.bf16.mxu0 0
        %496 = vmatpush1.bf16.msra.mxu0 0
        %497 = vmatprep.subr.bf16.mxu0 0
        %498 = vmatpush1.bf16.msra.mxu0 0
        %499 = vmatprep.subr.bf16.mxu0 0
        %500 = vmatpush1.bf16.msra.mxu0 0
        %501 = vmatprep.subr.bf16.mxu0 0
        %502 = vmatpush1.bf16.msra.mxu0 0
        %503 = vmatprep.subr.bf16.mxu0 0
        %504 = vmatpush1.bf16.msra.mxu0 0
        %505 = vmatprep.mubr.bf16.mxu0 0
        %506 = vmatmul.mubr.bf16.gmra.mrb[0].mxu0 %v471
        %v507 = vpop.f32.mrb[0].mxu0
        %v508 = vadd.f32 %v452, %v507
        %v509 = vpop.f32.mrb[0].mxu0
        %v510 = vpop.f32.mrb[0].mxu0
        %v511 = vadd.f32 %v455, %v510
        %v512 = vpop.f32.mrb[0].mxu0
        %513 = vdwg.mxu0
        %v514 = vlaneseq
        %v515 = vshrl.u32 %v514, 7
        %v516 = vsub.s32 0, %v515
        %v517 = vrot.slane %v386, %v516
        %v518 = vadd.f32 %v508, %v517
        %v519 = vadd.f32 %v511, %v517
        %v520 = vmax.f32 %v518, 0.0
        %v521 = vmax.f32 %v519, 0.0
        %v522 = vpack.c.bf16 %v521, %v520
        %v523 = vld [vmem:[%s4] sm:$0xf]
        %v524 = vld [vmem:[%s4 + $0x4] sm:$0xf]
        %v525 = vld [vmem:[%s4 + $0x8] sm:$0xf]
        %v526 = vld [vmem:[%s4 + $0xc] sm:$0xf]
        %v527 = vld [vmem:[%s4 + $0x10] sm:$0xf]
        %v528 = vld [vmem:[%s4 + $0x14] sm:$0xf]
        %v529 = vld [vmem:[%s4 + $0x18] sm:$0xf]
        %v530 = vld [vmem:[%s4 + $0x1c] sm:$0xf]
        %v531 = vld [vmem:[%s4 + $0x20] sm:$0xf]
        %v532 = vld [vmem:[%s4 + $0x24] sm:$0xf]
        %v533 = vld [vmem:[%s4 + $0x28] sm:$0xf]
        %v534 = vld [vmem:[%s4 + $0x2c] sm:$0xf]
        %v535 = vld [vmem:[%s4 + $0x30] sm:$0xf]
        %v536 = vld [vmem:[%s4 + $0x34] sm:$0xf]
        %v537 = vld [vmem:[%s4 + $0x38] sm:$0xf]
        %v538 = vld [vmem:[%s4 + $0x3c] sm:$0xf]
        %v539 = vlaneseq
        %v540 = vshrl.u32 %v539, 7
        %v541 = vsub.s32 1, %v540
        %v542 = vrot.slane %v386, %v541
        %v559 = vunpack.c.l.b16 %v523
        %v560 = vunpack.c.l.b16 %v524
        %v561 = vunpack.c.l.b16 %v525
        %v562 = vunpack.c.l.b16 %v526
        %v563 = vunpack.c.l.b16 %v527
        %v564 = vunpack.c.l.b16 %v528
        %v565 = vunpack.c.l.b16 %v529
        %v566 = vunpack.c.l.b16 %v530
        %v567 = vunpack.c.l.b16 %v531
        %v568 = vunpack.c.l.b16 %v532
        %v569 = vunpack.c.l.b16 %v533
        %v570 = vunpack.c.l.b16 %v534
        %v571 = vunpack.c.l.b16 %v535
        %v572 = vunpack.c.l.b16 %v536
        %v573 = vunpack.c.l.b16 %v537
        %v574 = vunpack.c.l.b16 %v538
        %v575 = vpack.c.b16 %v560, %v559
        %v576 = vpack.c.b16 %v562, %v561
        %v577 = vpack.c.b16 %v564, %v563
        %v578 = vpack.c.b16 %v566, %v565
        %v579 = vpack.c.b16 %v568, %v567
        %v580 = vpack.c.b16 %v570, %v569
        %v581 = vpack.c.b16 %v572, %v571
        %v582 = vpack.c.b16 %v574, %v573
        %591 = vmatprep.subr.bf16.mxu0 0
        %592 = vmatpush1.bf16.msra.mxu0 %v575
        %593 = vmatprep.subr.bf16.mxu0 0
        %594 = vmatpush1.bf16.msra.mxu0 %v576
        %595 = vmatprep.subr.bf16.mxu0 0
        %596 = vmatpush1.bf16.msra.mxu0 %v577
        %597 = vmatprep.subr.bf16.mxu0 0
        %598 = vmatpush1.bf16.msra.mxu0 %v578
        %599 = vmatprep.subr.bf16.mxu0 0
        %600 = vmatpush1.bf16.msra.mxu0 %v579
        %601 = vmatprep.subr.bf16.mxu0 0
        %602 = vmatpush1.bf16.msra.mxu0 %v580
        %603 = vmatprep.subr.bf16.mxu0 0
        %604 = vmatpush1.bf16.msra.mxu0 %v581
        %605 = vmatprep.subr.bf16.mxu0 0
        %606 = vmatpush1.bf16.msra.mxu0 %v582
        %607 = vmatprep.subr.bf16.mxu0 0
        %608 = vmatpush1.bf16.msra.mxu0 0
        %609 = vmatprep.subr.bf16.mxu0 0
        %610 = vmatpush1.bf16.msra.mxu0 0
        %611 = vmatprep.subr.bf16.mxu0 0
        %612 = vmatpush1.bf16.msra.mxu0 0
        %613 = vmatprep.subr.bf16.mxu0 0
        %614 = vmatpush1.bf16.msra.mxu0 0
        %615 = vmatprep.subr.bf16.mxu0 0
        %616 = vmatpush1.bf16.msra.mxu0 0
        %617 = vmatprep.subr.bf16.mxu0 0
        %618 = vmatpush1.bf16.msra.mxu0 0
        %619 = vmatprep.subr.bf16.mxu0 0
        %620 = vmatpush1.bf16.msra.mxu0 0
        %621 = vmatprep.subr.bf16.mxu0 0
        %622 = vmatpush1.bf16.msra.mxu0 0
        %623 = vmatprep.mubr.bf16.mxu0 0
        %624 = vmatmul.mubr.bf16.gmra.mrb[0].mxu0 %v522
        %v625 = vpop.f32.mrb[0].mxu0
        %v626 = vadd.f32 %v542, %v625
        %v627 = vpop.f32.mrb[0].mxu0
        %v628 = vpop.f32.mrb[0].mxu0
        %v629 = vadd.f32 %v542, %v628
        %v630 = vpop.f32.mrb[0].mxu0
        %631 = vdwg.mxu0
        %v632 = vmax.f32 %v626, 0.0
        %v633 = vmax.f32 %v629, 0.0
        %v634 = vpack.c.bf16 %v633, %v632
        %v635 = vld [vmem:[%s5] sm:$0xf]
        %v636 = vld [vmem:[%s5 + $0x4] sm:$0xf]
        %v637 = vld [vmem:[%s5 + $0x8] sm:$0xf]
        %v638 = vld [vmem:[%s5 + $0xc] sm:$0xf]
        %v639 = vld [vmem:[%s5 + $0x10] sm:$0xf]
        %v640 = vld [vmem:[%s5 + $0x14] sm:$0xf]
        %v641 = vld [vmem:[%s5 + $0x18] sm:$0xf]
        %v642 = vld [vmem:[%s5 + $0x1c] sm:$0xf]
        %v643 = vld [vmem:[%s5 + $0x20] sm:$0xf]
        %v644 = vld [vmem:[%s5 + $0x24] sm:$0xf]
        %v645 = vld [vmem:[%s5 + $0x28] sm:$0xf]
        %v646 = vld [vmem:[%s5 + $0x2c] sm:$0xf]
        %v647 = vld [vmem:[%s5 + $0x30] sm:$0xf]
        %v648 = vld [vmem:[%s5 + $0x34] sm:$0xf]
        %v649 = vld [vmem:[%s5 + $0x38] sm:$0xf]
        %v650 = vld [vmem:[%s5 + $0x3c] sm:$0xf]
        %v651 = vlaneseq
        %v652 = vshrl.u32 %v651, 7
        %v653 = vsub.s32 2, %v652
        %v654 = vrot.slane %v386, %v653
        %v671 = vunpack.c.l.b16 %v635
        %v672 = vunpack.c.l.b16 %v636
        %v673 = vunpack.c.l.b16 %v637
        %v674 = vunpack.c.l.b16 %v638
        %v675 = vunpack.c.l.b16 %v639
        %v676 = vunpack.c.l.b16 %v640
        %v677 = vunpack.c.l.b16 %v641
        %v678 = vunpack.c.l.b16 %v642
        %v679 = vunpack.c.l.b16 %v643
        %v680 = vunpack.c.l.b16 %v644
        %v681 = vunpack.c.l.b16 %v645
        %v682 = vunpack.c.l.b16 %v646
        %v683 = vunpack.c.l.b16 %v647
        %v684 = vunpack.c.l.b16 %v648
        %v685 = vunpack.c.l.b16 %v649
        %v686 = vunpack.c.l.b16 %v650
        %v687 = vpack.c.b16 %v672, %v671
        %v688 = vpack.c.b16 %v674, %v673
        %v689 = vpack.c.b16 %v676, %v675
        %v690 = vpack.c.b16 %v678, %v677
        %v691 = vpack.c.b16 %v680, %v679
        %v692 = vpack.c.b16 %v682, %v681
        %v693 = vpack.c.b16 %v684, %v683
        %v694 = vpack.c.b16 %v686, %v685
        %703 = vmatprep.subr.bf16.mxu0 0
        %704 = vmatpush1.bf16.msra.mxu0 %v687
        %705 = vmatprep.subr.bf16.mxu0 0
        %706 = vmatpush1.bf16.msra.mxu0 %v688
        %707 = vmatprep.subr.bf16.mxu0 0
        %708 = vmatpush1.bf16.msra.mxu0 %v689
        %709 = vmatprep.subr.bf16.mxu0 0
        %710 = vmatpush1.bf16.msra.mxu0 %v690
        %711 = vmatprep.subr.bf16.mxu0 0
        %712 = vmatpush1.bf16.msra.mxu0 %v691
        %713 = vmatprep.subr.bf16.mxu0 0
        %714 = vmatpush1.bf16.msra.mxu0 %v692
        %715 = vmatprep.subr.bf16.mxu0 0
        %716 = vmatpush1.bf16.msra.mxu0 %v693
        %717 = vmatprep.subr.bf16.mxu0 0
        %718 = vmatpush1.bf16.msra.mxu0 %v694
        %719 = vmatprep.subr.bf16.mxu0 0
        %720 = vmatpush1.bf16.msra.mxu0 0
        %721 = vmatprep.subr.bf16.mxu0 0
        %722 = vmatpush1.bf16.msra.mxu0 0
        %723 = vmatprep.subr.bf16.mxu0 0
        %724 = vmatpush1.bf16.msra.mxu0 0
        %725 = vmatprep.subr.bf16.mxu0 0
        %726 = vmatpush1.bf16.msra.mxu0 0
        %727 = vmatprep.subr.bf16.mxu0 0
        %728 = vmatpush1.bf16.msra.mxu0 0
        %729 = vmatprep.subr.bf16.mxu0 0
        %730 = vmatpush1.bf16.msra.mxu0 0
        %731 = vmatprep.subr.bf16.mxu0 0
        %732 = vmatpush1.bf16.msra.mxu0 0
        %733 = vmatprep.subr.bf16.mxu0 0
        %734 = vmatpush1.bf16.msra.mxu0 0
        %735 = vmatprep.mubr.bf16.mxu0 0
        %736 = vmatmul.mubr.bf16.gmra.mrb[0].mxu0 %v634
        %v737 = vpop.f32.mrb[0].mxu0
        %v738 = vadd.f32 %v654, %v737
        %v739 = vpop.f32.mrb[0].mxu0
        %v740 = vpop.f32.mrb[0].mxu0
        %v741 = vadd.f32 %v654, %v740
        %v742 = vpop.f32.mrb[0].mxu0
        %743 = vdwg.mxu0
        %v744 = vmax.f32 %v738, 0.0
        %v745 = vmax.f32 %v741, 0.0
        %v746 = vld [vmem:[%s7] sm:$0x1]
        %s747 = sld [smem:[#allocation2]]
        %v748 = vstv %s747
        %749 = vmatprep.subr.mxu0 0.0
        %750 = vmatpush1.xpose.msra.mxu0 %v744
        %751 = vmatprep.subr.mxu0 0.0
        %752 = vmatpush1.xpose.msra.mxu0 %v745
        %753 = vmatprep.subr.mxu0 0.0
        %754 = vmatpush1.xpose.msra.mxu0 0.0
        %755 = vmatprep.subr.mxu0 0.0
        %756 = vmatpush1.xpose.msra.mxu0 0.0
        %757 = vmatprep.subr.mxu0 0.0
        %758 = vmatpush1.xpose.msra.mxu0 0.0
        %759 = vmatprep.subr.mxu0 0.0
        %760 = vmatpush1.xpose.msra.mxu0 0.0
        %761 = vmatprep.subr.mxu0 0.0
        %762 = vmatpush1.xpose.msra.mxu0 0.0
        %763 = vmatprep.subr.mxu0 0.0
        %764 = vmatpush1.xpose.msra.mxu0 0.0
        %765 = vmatprep.subr.mxu0 0.0
        %766 = vmatpush1.xpose.msra.mxu0 0.0
        %767 = vmatprep.subr.mxu0 0.0
        %768 = vmatpush1.xpose.msra.mxu0 0.0
        %769 = vmatprep.subr.mxu0 0.0
        %770 = vmatpush1.xpose.msra.mxu0 0.0
        %771 = vmatprep.subr.mxu0 0.0
        %772 = vmatpush1.xpose.msra.mxu0 0.0
        %773 = vmatprep.subr.mxu0 0.0
        %774 = vmatpush1.xpose.msra.mxu0 0.0
        %775 = vmatprep.subr.mxu0 0.0
        %776 = vmatpush1.xpose.msra.mxu0 0.0
        %777 = vmatprep.subr.mxu0 0.0
        %778 = vmatpush1.xpose.msra.mxu0 0.0
        %779 = vmatprep.subr.mxu0 0.0
        %780 = vmatpush1.xpose.msra.mxu0 0.0
        %781 = vmatprep.subr.mxu0 0.0
        %782 = vmatpush1.xpose.msra.mxu0 0.0
        %783 = vmatprep.subr.mxu0 0.0
        %784 = vmatpush1.xpose.msra.mxu0 0.0
        %785 = vmatprep.subr.mxu0 0.0
        %786 = vmatpush1.xpose.msra.mxu0 0.0
        %787 = vmatprep.subr.mxu0 0.0
        %788 = vmatpush1.xpose.msra.mxu0 0.0
        %789 = vmatprep.subr.mxu0 0.0
        %790 = vmatpush1.xpose.msra.mxu0 0.0
        %791 = vmatprep.subr.mxu0 0.0
        %792 = vmatpush1.xpose.msra.mxu0 0.0
        %793 = vmatprep.subr.mxu0 0.0
        %794 = vmatpush1.xpose.msra.mxu0 0.0
        %795 = vmatprep.subr.mxu0 0.0
        %796 = vmatpush1.xpose.msra.mxu0 0.0
        %797 = vmatprep.subr.mxu0 0.0
        %798 = vmatpush1.xpose.msra.mxu0 0.0
        %799 = vmatprep.subr.mxu0 0.0
        %800 = vmatpush1.xpose.msra.mxu0 0.0
        %801 = vmatprep.subr.mxu0 0.0
        %802 = vmatpush1.xpose.msra.mxu0 0.0
        %803 = vmatprep.subr.mxu0 0.0
        %804 = vmatpush1.xpose.msra.mxu0 0.0
        %805 = vmatprep.subr.mxu0 0.0
        %806 = vmatpush1.xpose.msra.mxu0 0.0
        %807 = vmatprep.subr.mxu0 0.0
        %808 = vmatpush1.xpose.msra.mxu0 0.0
        %809 = vmatprep.subr.mxu0 0.0
        %810 = vmatpush1.xpose.msra.mxu0 0.0
        %811 = vmatprep.subr.mxu0 0.0
        %812 = vmatpush1.xpose.msra.mxu0 0.0
        %813 = vmatprep.mubr.f32.mxu0 0.0
        %814 = vmatmul.mubr.f32.gmra.mrb[0].mxu0 %v746
        %v815 = vpop.f32.mrb[0].mxu0
        %v816 = vadd.f32 %v748, %v815
        %v817 = vpop.f32.mrb[0].mxu0
        %818 = vdwg.mxu0
        %v819 = vsub.f32 0.0, %v816
        %v820 = vmul.f32 %v819, 1.442695
        %v821 = vpow.pop %v820
        %v822 = vadd.f32 %v821, 1.0
        %v823 = vrcp.pop %v822
        %v824 = vmul.f32 1.0, %v823
        %vm825 = vcmask 122880
        %826 = vst.msk [vmem:[%s372] sm:$0x1] %vm825, %v824
        %s827 = sand.u32 %s233, 1
        %s828 = scalar_lea.sflag [#allocation5], %s827
        %s829 = sand.u32 %s233, 1
        %s830 = scalar_lea.vmem [#allocation8], %s829
        // Predicated region
        $region65: #{tpu_custom_call.1} parent=55 // pred_check
          %p831 = pneg %p243
        $region66: #{tpu_custom_call.1} parent=55 // pred_check_branch
          %833 = sbr.rel (%p831) target = $region68
        $region67: #{tpu_custom_call.1} parent=55 // pred_region
          %s835 = ssub.s32 16, 16
          %836 = vsyncadd %s828, %s835
          %s837 = smul.addr %s26, 16
          %s838 = scalar_lea.hbm %s9, %s837
          %s840 = sshll.u32 %s830, 4
          %s841 = int_to_ptr.vmem [resolvable:$true] %s840
          %843 = dma.vmem_to_hbm [thread:$0]  %s841, 16, %s838, %s828
        $region68: #{tpu_custom_call.1} parent=55 // pred_fallthru
          _
      $region56: #{tpu_custom_call.1} parent=5 // pred_fallthru
        _
      %p844 = scmp.le.s32.totalorder 2, %s21
      // Predicated region
      $region69: #{tpu_custom_call.1} parent=5 // pred_check
        %p845 = pneg %p844
      $region70: #{tpu_custom_call.1} parent=5 // pred_check_branch
        %847 = sbr.rel (%p845) target = $region72
      $region71: #{tpu_custom_call.1} parent=5 // pred_region
        %s848 = ssub.s32 %s21, 2
        // Predicated region
        $region73: #{tpu_custom_call.1} parent=71 // pred_check
          %p849 = pneg %p249
        $region74: #{tpu_custom_call.1} parent=71 // pred_check_branch
          %851 = sbr.rel (%p849) target = $region76
        $region75: #{tpu_custom_call.1} parent=71 // pred_region
          %s852 = sand.u32 %s234, 1
          %s853 = scalar_lea.sflag [#allocation5], %s852
          %s854 = sand.u32 %s234, 1
          %s855 = scalar_lea.vmem [#allocation8], %s854
          %856 = dma.done %s853, 16
        $region76: #{tpu_custom_call.1} parent=71 // pred_fallthru
          _
      $region72: #{tpu_custom_call.1} parent=5 // pred_fallthru
        _
    $region6: #{tpu_custom_call.1} parent=1 // loop_footer
      %s25 = sadd.s32 1, %s21
    $region7: #{tpu_custom_call.1} parent=1 // loop_footer_branch
      %20 = sbr.rel target = $region3
    $region8: #{tpu_custom_call.1} parent=1 // loop_exit
      _
    %857 = vsyncpa [#allocation4], 1
    %s858 = scalar_lea.sflag [#allocation4], 1
    %859 = vsyncpa %s858, 1
    %860 = vsyncpa [#allocation7], 1
    %861 = vsyncpa [#allocation5], 1
    %s862 = scalar_lea.sflag [#allocation5], 1
    %863 = vsyncpa %s862, 1

</llo_original>
